<compile_context>
chip_gen: v7x
topology: tpu7x:2x2x1
jax: 0.10.0
libtpu: 0.0.40
codegen_flags: <defaults>
</compile_context>

<pallas_src>
import jax
import jax.numpy as jnp
from jax import lax
from jax.experimental import pallas as pl
from jax.experimental.pallas import tpu as pltpu


def _conv_ffn_kernel(x_ref, w1_ref, wd_ref, w2_ref, o_ref, pad_ref):
    """One batch image per grid step, channels-last.

    x_ref  : (H, W, C)        input image
    w1_ref : (C, 4C)          conv1_1 weights   (1x1 expand, transposed)
    wd_ref : (3, 3, 4C)       dwconv3_1 weights (depthwise 3x3)
    w2_ref : (4C, C)          tras_conv1 weights (1x1 project, transposed)
    o_ref  : (H, W, C)        output image
    pad_ref: (H+2, W+2, 4C)   VMEM scratch holding the zero-padded activation
    """
    H, W, C = x_ref.shape
    C4 = w1_ref.shape[1]

    x = x_ref[...].astype(jnp.float32)

    # ---- conv1_1: 1x1 pointwise expansion C -> 4C (MXU) ----
    h = jnp.dot(x.reshape(H * W, C), w1_ref[...].astype(jnp.float32),
                preferred_element_type=jnp.float32)
    h = h.reshape(H, W, C4)

    # ---- dwconv3_1: depthwise 3x3, padding=1 ----
    # Zero-padded halo lives in a persistent VMEM scratch buffer; the 3x3
    # stencil is 9 shifted multiply-accumulates (pure VPU work).
    pad_ref[...] = jnp.zeros_like(pad_ref)
    pad_ref[1:H + 1, 1:W + 1, :] = h
    wd = wd_ref[...].astype(jnp.float32)
    acc = jnp.zeros((H, W, C4), jnp.float32)
    for ki in range(3):
        for kj in range(3):
            acc = acc + (pad_ref[ki:ki + H, kj:kj + W, :]
                         * wd[ki:ki + 1, kj:kj + 1, :])

    # ---- SiLU (sigmoid goes to the EUP slot) ----
    acc = acc * jax.nn.sigmoid(acc)

    # ---- tras_conv1: 1x1 pointwise projection 4C -> C (MXU) ----
    out = jnp.dot(acc.reshape(H * W, C4), w2_ref[...].astype(jnp.float32),
                  preferred_element_type=jnp.float32)
    o_ref[...] = out.reshape(H, W, C).astype(o_ref.dtype)


def conv_ffn_forward(x, w_conv1, w_dw, w_proj, *,
                     vmem_limit_bytes=48 * 1024 * 1024):
    """Forward pass of ConvFFN_1.

    x      : (B, C, H, W)     NCHW, like the PyTorch module
    w_conv1: (4C, C, 1, 1)    conv1_1.weight   (bias=False)
    w_dw   : (4C, 1, 3, 3)    dwconv3_1.weight (groups=4C, bias=False)
    w_proj : (C, 4C, 1, 1)    tras_conv1.weight (bias=False)
    returns: (B, C, H, W)
    """
    B, C, H, W = x.shape
    C4 = w_conv1.shape[0]
    assert C4 == 4 * C, "conv1_1 must expand by 4x"

    # Channels-last so channels map to lanes and the 1x1 convs are plain matmuls.
    x_nhwc = jnp.transpose(x, (0, 2, 3, 1))                   # (B, H, W, C)
    w1 = jnp.transpose(w_conv1.reshape(C4, C), (1, 0))        # (C, 4C)
    wd = jnp.transpose(w_dw.reshape(C4, 3, 3), (1, 2, 0))     # (3, 3, 4C)
    w2 = jnp.transpose(w_proj.reshape(C, C4), (1, 0))         # (4C, C)

    # TODO(synk): for very large H*W (> a few MiB per image at 4C channels),
    # add a row-tile grid axis with a 1-row halo instead of whole-image blocks.
    out_nhwc = pl.pallas_call(
        _conv_ffn_kernel,
        out_shape=jax.ShapeDtypeStruct((B, H, W, C), x.dtype),
        grid=(B,),
        in_specs=[
            pl.BlockSpec((None, H, W, C), lambda b: (b, 0, 0, 0)),
            pl.BlockSpec((C, C4), lambda b: (0, 0)),
            pl.BlockSpec((3, 3, C4), lambda b: (0, 0, 0)),
            pl.BlockSpec((C4, C), lambda b: (0, 0)),
        ],
        out_specs=pl.BlockSpec((None, H, W, C), lambda b: (b, 0, 0, 0)),
        scratch_shapes=[pltpu.VMEM((H + 2, W + 2, C4), jnp.float32)],
        compiler_params=pltpu.CompilerParams(
            dimension_semantics=("parallel",),
            vmem_limit_bytes=vmem_limit_bytes,
        ),
    )(x_nhwc, w1, wd, w2)

    return jnp.transpose(out_nhwc, (0, 3, 1, 2))               # back to NCHW


def _reference(x, w_conv1, w_dw, w_proj):
    """Pure-JAX reference matching the PyTorch forward exactly."""
    dn = ('NCHW', 'OIHW', 'NCHW')
    y = lax.conv_general_dilated(x, w_conv1, (1, 1), 'VALID',
                                 dimension_numbers=dn)
    y = lax.conv_general_dilated(y, w_dw, (1, 1), ((1, 1), (1, 1)),
                                 dimension_numbers=dn,
                                 feature_group_count=w_dw.shape[0])
    y = y * jax.nn.sigmoid(y)                                   # SiLU
    y = lax.conv_general_dilated(y, w_proj, (1, 1), 'VALID',
                                 dimension_numbers=dn)
    return y


if __name__ == "__main__":
    key = jax.random.PRNGKey(0)
    B, C, H, W = 2, 4, 16, 16          # small demo shape (dim=4)
    C4 = 4 * C
    k1, k2, k3, k4 = jax.random.split(key, 4)

    x = jax.random.normal(k1, (B, C, H, W), dtype=jnp.float32)
    w_conv1 = 0.1 * jax.random.normal(k2, (C4, C, 1, 1), dtype=jnp.float32)
    w_dw = 0.1 * jax.random.normal(k3, (C4, 1, 3, 3), dtype=jnp.float32)
    w_proj = 0.1 * jax.random.normal(k4, (C, C4, 1, 1), dtype=jnp.float32)

    out = conv_ffn_forward(x, w_conv1, w_dw, w_proj)
    out = jax.block_until_ready(out)

    ref = _reference(x, w_conv1, w_dw, w_proj)
    assert out.shape == x.shape
    assert jnp.allclose(out, ref, atol=1e-4, rtol=1e-4), "mismatch vs reference"

    print("KERNEL_OK")
</pallas_src>

<mosaic_0001>
module attributes {stable_mosaic.version = 11 : i64} {
  func.func @_conv_ffn_kernel(%arg0: i32, %arg1: memref<1x16x16x4xf32, #tpu.memory_space<vmem>>, %arg2: memref<4x16xf32, #tpu.memory_space<vmem>>, %arg3: memref<3x3x16xf32, #tpu.memory_space<vmem>>, %arg4: memref<16x4xf32, #tpu.memory_space<vmem>>, %arg5: memref<1x16x16x4xf32, #tpu.memory_space<vmem>>, %arg6: memref<18x18x16xf32, #tpu.memory_space<vmem>>) attributes {dimension_semantics = [#tpu.dimension_semantics<parallel>], iteration_bounds = array<i64: 2>, scalar_prefetch = 0 : i64, scratch_operands = 1 : i64, tpu.core_type = #tpu.core_type<tc>, window_params = [{transform_indices = @transform_0, window_bounds = array<i64: 1, 16, 16, 4>}, {pipeline_mode = #tpu.pipeline_mode<synchronous>, transform_indices = @transform_1, window_bounds = array<i64: 4, 16>}, {pipeline_mode = #tpu.pipeline_mode<synchronous>, transform_indices = @transform_2, window_bounds = array<i64: 3, 3, 16>}, {pipeline_mode = #tpu.pipeline_mode<synchronous>, transform_indices = @transform_3, window_bounds = array<i64: 16, 4>}, {transform_indices = @transform_4, window_bounds = array<i64: 1, 16, 16, 4>}]} {
    %c0 = arith.constant 0 : index
    %c0_0 = arith.constant 0 : index
    %c0_1 = arith.constant 0 : index
    %c0_2 = arith.constant 0 : index
    %0 = vector.load %arg1[%c0, %c0_0, %c0_1, %c0_2] : memref<1x16x16x4xf32, #tpu.memory_space<vmem>>, vector<1x16x16x4xf32>
    %1 = vector.shape_cast %0 : vector<1x16x16x4xf32> to vector<16x16x4xf32>
    %2 = vector.shape_cast %1 : vector<16x16x4xf32> to vector<256x4xf32>
    %c0_3 = arith.constant 0 : index
    %c0_4 = arith.constant 0 : index
    %3 = vector.load %arg2[%c0_3, %c0_4] : memref<4x16xf32, #tpu.memory_space<vmem>>, vector<4x16xf32>
    %cst = arith.constant dense<0.000000e+00> : vector<256x16xf32>
    %4 = tpu.matmul %2, %3, %cst {dimension_numbers = #tpu.dot_dimension_numbers<[1], [0], [0], [1], [0, 0, 1, 1], [], []>} : vector<256x4xf32>, vector<4x16xf32>, vector<256x16xf32> -> vector<256x16xf32>
    %5 = vector.shape_cast %4 : vector<256x16xf32> to vector<16x16x16xf32>
    %cst_5 = arith.constant 0.000000e+00 : f32
    %6 = vector.broadcast %cst_5 : f32 to vector<18x18x16xf32>
    %c0_6 = arith.constant 0 : index
    %c0_7 = arith.constant 0 : index
    %c0_8 = arith.constant 0 : index
    %7 = vector.load %arg6[%c0_6, %c0_7, %c0_8] : memref<18x18x16xf32, #tpu.memory_space<vmem>>, vector<18x18x16xf32>
    tpu.vector_store %arg6[%c0_6, %c0_7, %c0_8], %6 {strides = array<i32>} : memref<18x18x16xf32, #tpu.memory_space<vmem>>, vector<18x18x16xf32>,
    %c1 = arith.constant 1 : index
    %c1_9 = arith.constant 1 : index
    %c0_10 = arith.constant 0 : index
    %8 = vector.load %arg6[%c1, %c1_9, %c0_10] : memref<18x18x16xf32, #tpu.memory_space<vmem>>, vector<16x16x16xf32>
    tpu.vector_store %arg6[%c1, %c1_9, %c0_10], %5 {strides = array<i32>} : memref<18x18x16xf32, #tpu.memory_space<vmem>>, vector<16x16x16xf32>,
    %c0_11 = arith.constant 0 : index
    %c0_12 = arith.constant 0 : index
    %c0_13 = arith.constant 0 : index
    %9 = vector.load %arg3[%c0_11, %c0_12, %c0_13] : memref<3x3x16xf32, #tpu.memory_space<vmem>>, vector<3x3x16xf32>
    %cst_14 = arith.constant 0.000000e+00 : f32
    %10 = vector.broadcast %cst_14 : f32 to vector<16x16x16xf32>
    %c0_15 = arith.constant 0 : index
    %c0_16 = arith.constant 0 : index
    %c0_17 = arith.constant 0 : index
    %11 = vector.load %arg6[%c0_15, %c0_16, %c0_17] : memref<18x18x16xf32, #tpu.memory_space<vmem>>, vector<16x16x16xf32>
    %12 = vector.extract_strided_slice %9 {offsets = [0, 0, 0], sizes = [1, 1, 16], strides = [1, 1, 1]} : vector<3x3x16xf32> to vector<1x1x16xf32>
    %13 = vector.broadcast %12 : vector<1x1x16xf32> to vector<16x16x16xf32>
    %14 = arith.mulf %11, %13 : vector<16x16x16xf32>
    %15 = arith.addf %10, %14 : vector<16x16x16xf32>
    %c0_18 = arith.constant 0 : index
    %c1_19 = arith.constant 1 : index
    %c0_20 = arith.constant 0 : index
    %16 = vector.load %arg6[%c0_18, %c1_19, %c0_20] : memref<18x18x16xf32, #tpu.memory_space<vmem>>, vector<16x16x16xf32>
    %17 = vector.extract_strided_slice %9 {offsets = [0, 1, 0], sizes = [1, 1, 16], strides = [1, 1, 1]} : vector<3x3x16xf32> to vector<1x1x16xf32>
    %18 = vector.broadcast %17 : vector<1x1x16xf32> to vector<16x16x16xf32>
    %19 = arith.mulf %16, %18 : vector<16x16x16xf32>
    %20 = arith.addf %15, %19 : vector<16x16x16xf32>
    %c0_21 = arith.constant 0 : index
    %c2 = arith.constant 2 : index
    %c0_22 = arith.constant 0 : index
    %21 = vector.load %arg6[%c0_21, %c2, %c0_22] : memref<18x18x16xf32, #tpu.memory_space<vmem>>, vector<16x16x16xf32>
    %22 = vector.extract_strided_slice %9 {offsets = [0, 2, 0], sizes = [1, 1, 16], strides = [1, 1, 1]} : vector<3x3x16xf32> to vector<1x1x16xf32>
    %23 = vector.broadcast %22 : vector<1x1x16xf32> to vector<16x16x16xf32>
    %24 = arith.mulf %21, %23 : vector<16x16x16xf32>
    %25 = arith.addf %20, %24 : vector<16x16x16xf32>
    %c1_23 = arith.constant 1 : index
    %c0_24 = arith.constant 0 : index
    %c0_25 = arith.constant 0 : index
    %26 = vector.load %arg6[%c1_23, %c0_24, %c0_25] : memref<18x18x16xf32, #tpu.memory_space<vmem>>, vector<16x16x16xf32>
    %27 = vector.extract_strided_slice %9 {offsets = [1, 0, 0], sizes = [1, 1, 16], strides = [1, 1, 1]} : vector<3x3x16xf32> to vector<1x1x16xf32>
    %28 = vector.broadcast %27 : vector<1x1x16xf32> to vector<16x16x16xf32>
    %29 = arith.mulf %26, %28 : vector<16x16x16xf32>
    %30 = arith.addf %25, %29 : vector<16x16x16xf32>
    %c1_26 = arith.constant 1 : index
    %c1_27 = arith.constant 1 : index
    %c0_28 = arith.constant 0 : index
    %31 = vector.load %arg6[%c1_26, %c1_27, %c0_28] : memref<18x18x16xf32, #tpu.memory_space<vmem>>, vector<16x16x16xf32>
    %32 = vector.extract_strided_slice %9 {offsets = [1, 1, 0], sizes = [1, 1, 16], strides = [1, 1, 1]} : vector<3x3x16xf32> to vector<1x1x16xf32>
    %33 = vector.broadcast %32 : vector<1x1x16xf32> to vector<16x16x16xf32>
    %34 = arith.mulf %31, %33 : vector<16x16x16xf32>
    %35 = arith.addf %30, %34 : vector<16x16x16xf32>
    %c1_29 = arith.constant 1 : index
    %c2_30 = arith.constant 2 : index
    %c0_31 = arith.constant 0 : index
    %36 = vector.load %arg6[%c1_29, %c2_30, %c0_31] : memref<18x18x16xf32, #tpu.memory_space<vmem>>, vector<16x16x16xf32>
    %37 = vector.extract_strided_slice %9 {offsets = [1, 2, 0], sizes = [1, 1, 16], strides = [1, 1, 1]} : vector<3x3x16xf32> to vector<1x1x16xf32>
    %38 = vector.broadcast %37 : vector<1x1x16xf32> to vector<16x16x16xf32>
    %39 = arith.mulf %36, %38 : vector<16x16x16xf32>
    %40 = arith.addf %35, %39 : vector<16x16x16xf32>
    %c2_32 = arith.constant 2 : index
    %c0_33 = arith.constant 0 : index
    %c0_34 = arith.constant 0 : index
    %41 = vector.load %arg6[%c2_32, %c0_33, %c0_34] : memref<18x18x16xf32, #tpu.memory_space<vmem>>, vector<16x16x16xf32>
    %42 = vector.extract_strided_slice %9 {offsets = [2, 0, 0], sizes = [1, 1, 16], strides = [1, 1, 1]} : vector<3x3x16xf32> to vector<1x1x16xf32>
    %43 = vector.broadcast %42 : vector<1x1x16xf32> to vector<16x16x16xf32>
    %44 = arith.mulf %41, %43 : vector<16x16x16xf32>
    %45 = arith.addf %40, %44 : vector<16x16x16xf32>
    %c2_35 = arith.constant 2 : index
    %c1_36 = arith.constant 1 : index
    %c0_37 = arith.constant 0 : index
    %46 = vector.load %arg6[%c2_35, %c1_36, %c0_37] : memref<18x18x16xf32, #tpu.memory_space<vmem>>, vector<16x16x16xf32>
    %47 = vector.extract_strided_slice %9 {offsets = [2, 1, 0], sizes = [1, 1, 16], strides = [1, 1, 1]} : vector<3x3x16xf32> to vector<1x1x16xf32>
    %48 = vector.broadcast %47 : vector<1x1x16xf32> to vector<16x16x16xf32>
    %49 = arith.mulf %46, %48 : vector<16x16x16xf32>
    %50 = arith.addf %45, %49 : vector<16x16x16xf32>
    %c2_38 = arith.constant 2 : index
    %c2_39 = arith.constant 2 : index
    %c0_40 = arith.constant 0 : index
    %51 = vector.load %arg6[%c2_38, %c2_39, %c0_40] : memref<18x18x16xf32, #tpu.memory_space<vmem>>, vector<16x16x16xf32>
    %52 = vector.extract_strided_slice %9 {offsets = [2, 2, 0], sizes = [1, 1, 16], strides = [1, 1, 1]} : vector<3x3x16xf32> to vector<1x1x16xf32>
    %53 = vector.broadcast %52 : vector<1x1x16xf32> to vector<16x16x16xf32>
    %54 = arith.mulf %51, %53 : vector<16x16x16xf32>
    %55 = arith.addf %50, %54 : vector<16x16x16xf32>
    %56 = arith.negf %55 : vector<16x16x16xf32>
    %57 = math.exp %56 : vector<16x16x16xf32>
    %cst_41 = arith.constant 1.000000e+00 : f32
    %58 = vector.broadcast %cst_41 : f32 to vector<16x16x16xf32>
    %59 = arith.addf %58, %57 : vector<16x16x16xf32>
    %60 = arith.divf %58, %59 : vector<16x16x16xf32>
    %61 = arith.mulf %55, %60 : vector<16x16x16xf32>
    %62 = vector.shape_cast %61 : vector<16x16x16xf32> to vector<256x16xf32>
    %c0_42 = arith.constant 0 : index
    %c0_43 = arith.constant 0 : index
    %63 = vector.load %arg4[%c0_42, %c0_43] : memref<16x4xf32, #tpu.memory_space<vmem>>, vector<16x4xf32>
    %cst_44 = arith.constant dense<0.000000e+00> : vector<256x4xf32>
    %64 = tpu.matmul %62, %63, %cst_44 {dimension_numbers = #tpu.dot_dimension_numbers<[1], [0], [0], [1], [0, 0, 1, 1], [], []>} : vector<256x16xf32>, vector<16x4xf32>, vector<256x4xf32> -> vector<256x4xf32>
    %65 = vector.shape_cast %64 : vector<256x4xf32> to vector<16x16x4xf32>
    %c0_45 = arith.constant 0 : index
    %c0_46 = arith.constant 0 : index
    %c0_47 = arith.constant 0 : index
    %c0_48 = arith.constant 0 : index
    %66 = vector.load %arg5[%c0_45, %c0_46, %c0_47, %c0_48] : memref<1x16x16x4xf32, #tpu.memory_space<vmem>>, vector<1x16x16x4xf32>
    %67 = vector.shape_cast %66 : vector<1x16x16x4xf32> to vector<16x16x4xf32>
    %68 = vector.shape_cast %65 : vector<16x16x4xf32> to vector<1x16x16x4xf32>
    tpu.vector_store %arg5[%c0_45, %c0_46, %c0_47, %c0_48], %68 {strides = array<i32>} : memref<1x16x16x4xf32, #tpu.memory_space<vmem>>, vector<1x16x16x4xf32>,
    return
  }
  func.func @transform_0(%arg0: i32) -> (i32, i32, i32, i32) {
    %c0_i32 = arith.constant 0 : i32
    %c0_i32_0 = arith.constant 0 : i32
    %c0_i32_1 = arith.constant 0 : i32
    %c0_i32_2 = arith.constant 0 : i32
    return %arg0, %c0_i32, %c0_i32_0, %c0_i32_1 : i32, i32, i32, i32
  }
  func.func @transform_1(%arg0: i32) -> (i32, i32) {
    %c0_i32 = arith.constant 0 : i32
    %c0_i32_0 = arith.constant 0 : i32
    %c0_i32_1 = arith.constant 0 : i32
    return %c0_i32, %c0_i32_0 : i32, i32
  }
  func.func @transform_2(%arg0: i32) -> (i32, i32, i32) {
    %c0_i32 = arith.constant 0 : i32
    %c0_i32_0 = arith.constant 0 : i32
    %c0_i32_1 = arith.constant 0 : i32
    %c0_i32_2 = arith.constant 0 : i32
    return %c0_i32, %c0_i32_0, %c0_i32_1 : i32, i32, i32
  }
  func.func @transform_3(%arg0: i32) -> (i32, i32) {
    %c0_i32 = arith.constant 0 : i32
    %c0_i32_0 = arith.constant 0 : i32
    %c0_i32_1 = arith.constant 0 : i32
    return %c0_i32, %c0_i32_0 : i32, i32
  }
  func.func @transform_4(%arg0: i32) -> (i32, i32, i32, i32) {
    %c0_i32 = arith.constant 0 : i32
    %c0_i32_0 = arith.constant 0 : i32
    %c0_i32_1 = arith.constant 0 : i32
    %c0_i32_2 = arith.constant 0 : i32
    return %arg0, %c0_i32, %c0_i32_0, %c0_i32_1 : i32, i32, i32, i32
  }
}

</mosaic_0001>

<llo_original>
// kernel: tpu_custom_call.1
$region0: #{tpu_custom_call.1}
  #allocation0 [shape = 'u32[]', space=smem, size = 0x4, offset = 0x4, fixed_abs, tag = 'smem constant byte address 0x4 - core index']
  #allocation1 [shape = 'u32[144,128]{1,0:T(1,128)}', space=vmem, size = 0x12000, scoped, tag = 'internal scratch']
  #allocation2 [shape = 'f32[18,18,16]{2,1,0:T(8,128)}', space=vmem, size = 0x36000, scoped, tag = 'scratch operand']
  %s0 = inlined_call_operand.vmem [shape: f32[2,16,16,4], index: 0, kind: input, shape index: {}]
  %s1 = inlined_call_operand.vmem [shape: f32[4,16], index: 1, kind: input, shape index: {}]
  %s2 = inlined_call_operand.vmem [shape: f32[3,3,16], index: 2, kind: input, shape index: {}]
  %s3 = inlined_call_operand.vmem [shape: f32[16,4], index: 3, kind: input, shape index: {}]
  %s4 = inlined_call_operand.vmem [shape: f32[2,16,16,4], index: 4, kind: output, shape index: {}]
  %s5 = sld [smem:[#allocation0]]
  $region49: #{tpu_custom_call.1} parent=0
    _
  %s7 = ssub.s32 1, %s5
  %s8 = scalar_select 0, %s7, %s5
  loop: start=0, step=1, limit=4
  $region2: #{tpu_custom_call.1} parent=0 // loop_pre_header
    _
  $region3: #{tpu_custom_call.1} parent=0 // loop_header
    %s10 = sphi 0, %s14
    %p11 = scmp.ge.s32.totalorder %s10, 4
    %s20 = sphi 0, %s22
    %s23 = sphi 0, %s20
    %s24 = sphi 0, %s23
    %s40 = sphi 0, %s24
    %s44 = sphi 0, %s44
    %s46 = sphi 0, %s44
    %s47 = sphi 0, %s46
    %s61 = sphi 0, %s47
    %s65 = sphi 0, %s65
    %s67 = sphi 0, %s65
    %s68 = sphi 0, %s67
    %s82 = sphi 0, %s68
    %s86 = sphi 0, %s86
    %s88 = sphi 0, %s86
    %s89 = sphi 0, %s88
    %s103 = sphi 0, %s89
    %s109 = sphi 0, %s111
    %s112 = sphi 0, %s109
    %s113 = sphi 0, %s112
    %s129 = sphi 0, %s113
  $region4: #{tpu_custom_call.1} parent=0 // loop_header_branch
    %13 = sbr.rel (%p11) target = $region8
  $region5: #{tpu_custom_call.1} parent=0 // loop_body
    %s15 = ssub.s32 %s10, 1
    %s16 = ssub.s32 %s10, 2
    %s17 = sadd.s32 %s10, 1
    %s18 = ssub.s32 %s10, %s17
    %p19 = scmp.eq.s32.totalorder %s18, 0
    %s21 = sadd.s32 %s20, 1
    %s22 = scalar_select %p19, %s20, %s21
    %p25 = pneg %p19
    %p26 = scmp.eq.s32.totalorder %s10, 1
    %p27 = por %p25, %p26
    %p28 = scmp.ne.s32.totalorder %s20, %s23
    %p29 = scmp.eq.s32.totalorder %s10, 0
    %p30 = por %p28, %p29
    %p31 = scmp.ne.s32.totalorder %s20, %s23
    %p32 = scmp.eq.s32.totalorder %s15, 1
    %p33 = por %p31, %p32
    %p34 = scmp.ne.s32.totalorder %s23, %s24
    %p35 = scmp.eq.s32.totalorder %s15, 0
    %p36 = por %p34, %p35
    %p37 = scmp.ne.s32.totalorder %s23, %s24
    %p38 = scmp.eq.s32.totalorder %s16, 1
    %p39 = por %p37, %p38
    %p41 = scmp.ne.s32.totalorder %s24, %s40
    %p42 = scmp.eq.s32.totalorder %s16, 0
    %p43 = por %p41, %p42
    %s45 = sadd.s32 %s44, 1
    %p48 = scmp.eq.s32.totalorder %s10, 1
    %p49 = scmp.ne.s32.totalorder %s44, %s46
    %p50 = scmp.eq.s32.totalorder %s10, 0
    %p51 = por %p49, %p50
    %p52 = scmp.ne.s32.totalorder %s44, %s46
    %p53 = scmp.eq.s32.totalorder %s15, 1
    %p54 = por %p52, %p53
    %p55 = scmp.ne.s32.totalorder %s46, %s47
    %p56 = scmp.eq.s32.totalorder %s15, 0
    %p57 = por %p55, %p56
    %p58 = scmp.ne.s32.totalorder %s46, %s47
    %p59 = scmp.eq.s32.totalorder %s16, 1
    %p60 = por %p58, %p59
    %p62 = scmp.ne.s32.totalorder %s47, %s61
    %p63 = scmp.eq.s32.totalorder %s16, 0
    %p64 = por %p62, %p63
    %s66 = sadd.s32 %s65, 1
    %p69 = scmp.eq.s32.totalorder %s10, 1
    %p70 = scmp.ne.s32.totalorder %s65, %s67
    %p71 = scmp.eq.s32.totalorder %s10, 0
    %p72 = por %p70, %p71
    %p73 = scmp.ne.s32.totalorder %s65, %s67
    %p74 = scmp.eq.s32.totalorder %s15, 1
    %p75 = por %p73, %p74
    %p76 = scmp.ne.s32.totalorder %s67, %s68
    %p77 = scmp.eq.s32.totalorder %s15, 0
    %p78 = por %p76, %p77
    %p79 = scmp.ne.s32.totalorder %s67, %s68
    %p80 = scmp.eq.s32.totalorder %s16, 1
    %p81 = por %p79, %p80
    %p83 = scmp.ne.s32.totalorder %s68, %s82
    %p84 = scmp.eq.s32.totalorder %s16, 0
    %p85 = por %p83, %p84
    %s87 = sadd.s32 %s86, 1
    %p90 = scmp.eq.s32.totalorder %s10, 1
    %p91 = scmp.ne.s32.totalorder %s86, %s88
    %p92 = scmp.eq.s32.totalorder %s10, 0
    %p93 = por %p91, %p92
    %p94 = scmp.ne.s32.totalorder %s86, %s88
    %p95 = scmp.eq.s32.totalorder %s15, 1
    %p96 = por %p94, %p95
    %p97 = scmp.ne.s32.totalorder %s88, %s89
    %p98 = scmp.eq.s32.totalorder %s15, 0
    %p99 = por %p97, %p98
    %p100 = scmp.ne.s32.totalorder %s88, %s89
    %p101 = scmp.eq.s32.totalorder %s16, 1
    %p102 = por %p100, %p101
    %p104 = scmp.ne.s32.totalorder %s89, %s103
    %p105 = scmp.eq.s32.totalorder %s16, 0
    %p106 = por %p104, %p105
    %s107 = ssub.s32 %s10, %s17
    %p108 = scmp.eq.s32.totalorder %s107, 0
    %s110 = sadd.s32 %s109, 1
    %s111 = scalar_select %p108, %s109, %s110
    %p114 = pneg %p108
    %p115 = scmp.eq.s32.totalorder %s10, 1
    %p116 = por %p114, %p115
    %p117 = scmp.ne.s32.totalorder %s109, %s112
    %p118 = scmp.eq.s32.totalorder %s10, 0
    %p119 = por %p117, %p118
    %p120 = scmp.ne.s32.totalorder %s109, %s112
    %p121 = scmp.eq.s32.totalorder %s15, 1
    %p122 = por %p120, %p121
    %p123 = scmp.ne.s32.totalorder %s112, %s113
    %p124 = scmp.eq.s32.totalorder %s15, 0
    %p125 = por %p123, %p124
    %p126 = scmp.ne.s32.totalorder %s112, %s113
    %p127 = scmp.eq.s32.totalorder %s16, 1
    %p128 = por %p126, %p127
    %p130 = scmp.ne.s32.totalorder %s113, %s129
    %p131 = scmp.eq.s32.totalorder %s16, 0
    %p132 = por %p130, %p131
    %p133 = scmp.le.s32.totalorder 1, %s10
    %p134 = scmp.lt.s32.totalorder %s10, 3
    %p135 = pnand %p133, %p134
    %p136 = pneg %p135
    // Predicated region
    $region9: #{tpu_custom_call.1} parent=5 // pred_check
      _
    $region10: #{tpu_custom_call.1} parent=5 // pred_check_branch
      %138 = sbr.rel (%p135) target = $region12
    $region11: #{tpu_custom_call.1} parent=5 // pred_region
      %s139 = ssub.s32 %s10, 1
      // Predicated region
      $region13: #{tpu_custom_call.1} parent=11 // pred_check
        %p140 = pneg %p57
      $region14: #{tpu_custom_call.1} parent=11 // pred_check_branch
        %142 = sbr.rel (%p140) target = $region16
      $region15: #{tpu_custom_call.1} parent=11 // pred_region
        _
      $region16: #{tpu_custom_call.1} parent=11 // pred_fallthru
        _
      // Predicated region
      $region17: #{tpu_custom_call.1} parent=11 // pred_check
        %p143 = pneg %p78
      $region18: #{tpu_custom_call.1} parent=11 // pred_check_branch
        %145 = sbr.rel (%p143) target = $region20
      $region19: #{tpu_custom_call.1} parent=11 // pred_region
        _
      $region20: #{tpu_custom_call.1} parent=11 // pred_fallthru
        _
      // Predicated region
      $region21: #{tpu_custom_call.1} parent=11 // pred_check
        %p146 = pneg %p99
      $region22: #{tpu_custom_call.1} parent=11 // pred_check_branch
        %148 = sbr.rel (%p146) target = $region24
      $region23: #{tpu_custom_call.1} parent=11 // pred_region
        _
      $region24: #{tpu_custom_call.1} parent=11 // pred_fallthru
        _
    $region12: #{tpu_custom_call.1} parent=5 // pred_fallthru
      _
    %p149 = scmp.lt.s32.totalorder %s10, 2
    // Predicated region
    $region25: #{tpu_custom_call.1} parent=5 // pred_check
      %p150 = pneg %p149
    $region26: #{tpu_custom_call.1} parent=5 // pred_check_branch
      %152 = sbr.rel (%p150) target = $region28
    $region27: #{tpu_custom_call.1} parent=5 // pred_region
      // Predicated region
      $region29: #{tpu_custom_call.1} parent=27 // pred_check
        %p153 = pneg %p30
      $region30: #{tpu_custom_call.1} parent=27 // pred_check_branch
        %155 = sbr.rel (%p153) target = $region32
      $region31: #{tpu_custom_call.1} parent=27 // pred_region
        %p156 = scmp.lt.s32.totalorder %s10, 1
        %s157 = scalar_select %p156, %s10, 1
        %s158 = smul.addr %s157, 32
        %s159 = smul.addr %s158, 8
        %s160 = scalar_lea.vmem %s0, %s159
      $region32: #{tpu_custom_call.1} parent=27 // pred_fallthru
        _
    $region28: #{tpu_custom_call.1} parent=5 // pred_fallthru
      _
    %p161 = scmp.le.s32.totalorder 1, %s10
    %p162 = scmp.lt.s32.totalorder %s10, 3
    %p163 = pnand %p161, %p162
    %p164 = pneg %p163
    // Predicated region
    $region33: #{tpu_custom_call.1} parent=5 // pred_check
      _
    $region34: #{tpu_custom_call.1} parent=5 // pred_check_branch
      %166 = sbr.rel (%p163) target = $region36
    $region35: #{tpu_custom_call.1} parent=5 // pred_region
      %s167 = ssub.s32 %s10, 1
      %p168 = scmp.lt.s32.totalorder %s15, 1
      %s169 = scalar_select %p168, %s15, 1
      %s170 = smul.addr %s169, 32
      %s171 = smul.addr %s170, 8
      %s172 = scalar_lea.vmem %s0, %s171
      %p173 = pneg %p36
      %p174 = pneg %p33
      %p175 = pneg %p57
      %p176 = pneg %p54
      %p177 = pneg %p78
      %p178 = pneg %p75
      %p179 = pneg %p99
      %p180 = pneg %p96
      %p181 = pneg %p125
      %p182 = pneg %p122
      %p183 = scmp.lt.s32.totalorder %s15, 1
      %s184 = scalar_select %p183, %s15, 1
      %s185 = smul.addr %s184, 32
      %s186 = smul.addr %s185, 8
      %s187 = scalar_lea.vmem %s4, %s186
      %p188 = scmp.lt.s32.totalorder %s15, 1
      %s189 = scalar_select %p188, %s15, 1
      %s190 = smul.addr %s189, 32
      %s191 = smul.addr %s190, 8
      %s192 = scalar_lea.vmem %s0, %s191
      %p193 = scmp.lt.s32.totalorder %s15, 1
      %s194 = scalar_select %p193, %s15, 1
      %s195 = smul.addr %s194, 32
      %s196 = smul.addr %s195, 8
      %s197 = scalar_lea.vmem %s4, %s196
      %v198 = vld [vmem:[%s192] sm:$0xff]
      %v199 = vld [vmem:[%s192 + $0x8] sm:$0xff]
      %v200 = vld [vmem:[%s192 + $0x10] sm:$0xff]
      %v201 = vld [vmem:[%s192 + $0x18] sm:$0xff]
      %v202 = vld [vmem:[%s192 + $0x20] sm:$0xff]
      %v203 = vld [vmem:[%s192 + $0x28] sm:$0xff]
      %v204 = vld [vmem:[%s192 + $0x30] sm:$0xff]
      %v205 = vld [vmem:[%s192 + $0x38] sm:$0xff]
      %v206 = vld [vmem:[%s192 + $0x40] sm:$0xff]
      %v207 = vld [vmem:[%s192 + $0x48] sm:$0xff]
      %v208 = vld [vmem:[%s192 + $0x50] sm:$0xff]
      %v209 = vld [vmem:[%s192 + $0x58] sm:$0xff]
      %v210 = vld [vmem:[%s192 + $0x60] sm:$0xff]
      %v211 = vld [vmem:[%s192 + $0x68] sm:$0xff]
      %v212 = vld [vmem:[%s192 + $0x70] sm:$0xff]
      %v213 = vld [vmem:[%s192 + $0x78] sm:$0xff]
      %v214 = vld [vmem:[%s192 + $0x80] sm:$0xff]
      %v215 = vld [vmem:[%s192 + $0x88] sm:$0xff]
      %v216 = vld [vmem:[%s192 + $0x90] sm:$0xff]
      %v217 = vld [vmem:[%s192 + $0x98] sm:$0xff]
      %v218 = vld [vmem:[%s192 + $0xa0] sm:$0xff]
      %v219 = vld [vmem:[%s192 + $0xa8] sm:$0xff]
      %v220 = vld [vmem:[%s192 + $0xb0] sm:$0xff]
      %v221 = vld [vmem:[%s192 + $0xb8] sm:$0xff]
      %v222 = vld [vmem:[%s192 + $0xc0] sm:$0xff]
      %v223 = vld [vmem:[%s192 + $0xc8] sm:$0xff]
      %v224 = vld [vmem:[%s192 + $0xd0] sm:$0xff]
      %v225 = vld [vmem:[%s192 + $0xd8] sm:$0xff]
      %v226 = vld [vmem:[%s192 + $0xe0] sm:$0xff]
      %v227 = vld [vmem:[%s192 + $0xe8] sm:$0xff]
      %v228 = vld [vmem:[%s192 + $0xf0] sm:$0xff]
      %v229 = vld [vmem:[%s192 + $0xf8] sm:$0xff]
      %v230 = vld [vmem:[%s1] sm:$0xf]
      %vm231 = vcmask 31744
      %v233 = vsel %vm231, %v198, 0
      %v236 = vsel %vm231, %v199, 0
      %v239 = vsel %vm231, %v200, 0
      %v242 = vsel %vm231, %v201, 0
      %v245 = vsel %vm231, %v202, 0
      %v248 = vsel %vm231, %v203, 0
      %v251 = vsel %vm231, %v204, 0
      %v254 = vsel %vm231, %v205, 0
      %v257 = vsel %vm231, %v206, 0
      %v260 = vsel %vm231, %v207, 0
      %v263 = vsel %vm231, %v208, 0
      %v266 = vsel %vm231, %v209, 0
      %v269 = vsel %vm231, %v210, 0
      %v272 = vsel %vm231, %v211, 0
      %v275 = vsel %vm231, %v212, 0
      %v278 = vsel %vm231, %v213, 0
      %v281 = vsel %vm231, %v214, 0
      %v284 = vsel %vm231, %v215, 0
      %v287 = vsel %vm231, %v216, 0
      %v290 = vsel %vm231, %v217, 0
      %v293 = vsel %vm231, %v218, 0
      %v296 = vsel %vm231, %v219, 0
      %v299 = vsel %vm231, %v220, 0
      %v302 = vsel %vm231, %v221, 0
      %v305 = vsel %vm231, %v222, 0
      %v308 = vsel %vm231, %v223, 0
      %v311 = vsel %vm231, %v224, 0
      %v314 = vsel %vm231, %v225, 0
      %v317 = vsel %vm231, %v226, 0
      %v320 = vsel %vm231, %v227, 0
      %v323 = vsel %vm231, %v228, 0
      %v326 = vsel %vm231, %v229, 0
      %vm328 = vcmask 1043456
      %v330 = vsel %vm328, %v230, 0
      %332 = vmatprep.subr.mxu0 0.0
      %333 = vmatpush1.msra.mxu0 %v330
      %334 = vmatprep.subr.mxu0 0.0
      %335 = vmatpush1.msra.mxu0 0.0
      %336 = vmatprep.subr.mxu0 0.0
      %337 = vmatpush1.msra.mxu0 0.0
      %338 = vmatprep.subr.mxu0 0.0
      %339 = vmatpush1.msra.mxu0 0.0
      %340 = vmatprep.subr.mxu0 0.0
      %341 = vmatpush1.msra.mxu0 0.0
      %342 = vmatprep.subr.mxu0 0.0
      %343 = vmatpush1.msra.mxu0 0.0
      %344 = vmatprep.subr.mxu0 0.0
      %345 = vmatpush1.msra.mxu0 0.0
      %346 = vmatprep.subr.mxu0 0.0
      %347 = vmatpush1.msra.mxu0 0.0
      %348 = vmatprep.subr.mxu0 0.0
      %349 = vmatpush1.msra.mxu0 0.0
      %350 = vmatprep.subr.mxu0 0.0
      %351 = vmatpush1.msra.mxu0 0.0
      %352 = vmatprep.subr.mxu0 0.0
      %353 = vmatpush1.msra.mxu0 0.0
      %354 = vmatprep.subr.mxu0 0.0
      %355 = vmatpush1.msra.mxu0 0.0
      %356 = vmatprep.subr.mxu0 0.0
      %357 = vmatpush1.msra.mxu0 0.0
      %358 = vmatprep.subr.mxu0 0.0
      %359 = vmatpush1.msra.mxu0 0.0
      %360 = vmatprep.subr.mxu0 0.0
      %361 = vmatpush1.msra.mxu0 0.0
      %362 = vmatprep.subr.mxu0 0.0
      %363 = vmatpush1.msra.mxu0 0.0
      %364 = vmatprep.subr.mxu0 0.0
      %365 = vmatpush1.msra.mxu0 0.0
      %366 = vmatprep.subr.mxu0 0.0
      %367 = vmatpush1.msra.mxu0 0.0
      %368 = vmatprep.subr.mxu0 0.0
      %369 = vmatpush1.msra.mxu0 0.0
      %370 = vmatprep.subr.mxu0 0.0
      %371 = vmatpush1.msra.mxu0 0.0
      %372 = vmatprep.subr.mxu0 0.0
      %373 = vmatpush1.msra.mxu0 0.0
      %374 = vmatprep.subr.mxu0 0.0
      %375 = vmatpush1.msra.mxu0 0.0
      %376 = vmatprep.subr.mxu0 0.0
      %377 = vmatpush1.msra.mxu0 0.0
      %378 = vmatprep.subr.mxu0 0.0
      %379 = vmatpush1.msra.mxu0 0.0
      %380 = vmatprep.subr.mxu0 0.0
      %381 = vmatpush1.msra.mxu0 0.0
      %382 = vmatprep.subr.mxu0 0.0
      %383 = vmatpush1.msra.mxu0 0.0
      %384 = vmatprep.subr.mxu0 0.0
      %385 = vmatpush1.msra.mxu0 0.0
      %386 = vmatprep.subr.mxu0 0.0
      %387 = vmatpush1.msra.mxu0 0.0
      %388 = vmatprep.subr.mxu0 0.0
      %389 = vmatpush1.msra.mxu0 0.0
      %390 = vmatprep.subr.mxu0 0.0
      %391 = vmatpush1.msra.mxu0 0.0
      %392 = vmatprep.subr.mxu0 0.0
      %393 = vmatpush1.msra.mxu0 0.0
      %394 = vmatprep.subr.mxu0 0.0
      %395 = vmatpush1.msra.mxu0 0.0
      %396 = vmatprep.mubr.f32.mxu0 0.0
      %397 = vmatmul.mubr.f32.gmra.mrb[0].mxu0 %v233
      %v398 = vpop.f32.mrb[0].mxu0
      %v399 = vadd.f32 0.0, %v398
      %v400 = vpop.f32.mrb[0].mxu0
      %401 = vmatprep.mubr.f32.mxu0 0.0
      %402 = vmatmul.mubr.f32.gmra.mrb[0].mxu0 %v236
      %v403 = vpop.f32.mrb[0].mxu0
      %v404 = vadd.f32 0.0, %v403
      %v405 = vpop.f32.mrb[0].mxu0
      %406 = vmatprep.mubr.f32.mxu0 0.0
      %407 = vmatmul.mubr.f32.gmra.mrb[0].mxu0 %v239
      %v408 = vpop.f32.mrb[0].mxu0
      %v409 = vadd.f32 0.0, %v408
      %v410 = vpop.f32.mrb[0].mxu0
      %411 = vmatprep.mubr.f32.mxu0 0.0
      %412 = vmatmul.mubr.f32.gmra.mrb[0].mxu0 %v242
      %v413 = vpop.f32.mrb[0].mxu0
      %v414 = vadd.f32 0.0, %v413
      %v415 = vpop.f32.mrb[0].mxu0
      %416 = vmatprep.mubr.f32.mxu0 0.0
      %417 = vmatmul.mubr.f32.gmra.mrb[0].mxu0 %v245
      %v418 = vpop.f32.mrb[0].mxu0
      %v419 = vadd.f32 0.0, %v418
      %v420 = vpop.f32.mrb[0].mxu0
      %421 = vmatprep.mubr.f32.mxu0 0.0
      %422 = vmatmul.mubr.f32.gmra.mrb[0].mxu0 %v248
      %v423 = vpop.f32.mrb[0].mxu0
      %v424 = vadd.f32 0.0, %v423
      %v425 = vpop.f32.mrb[0].mxu0
      %426 = vmatprep.mubr.f32.mxu0 0.0
      %427 = vmatmul.mubr.f32.gmra.mrb[0].mxu0 %v251
      %v428 = vpop.f32.mrb[0].mxu0
      %v429 = vadd.f32 0.0, %v428
      %v430 = vpop.f32.mrb[0].mxu0
      %431 = vmatprep.mubr.f32.mxu0 0.0
      %432 = vmatmul.mubr.f32.gmra.mrb[0].mxu0 %v254
      %v433 = vpop.f32.mrb[0].mxu0
      %v434 = vadd.f32 0.0, %v433
      %v435 = vpop.f32.mrb[0].mxu0
      %436 = vmatprep.mubr.f32.mxu0 0.0
      %437 = vmatmul.mubr.f32.gmra.mrb[0].mxu0 %v257
      %v438 = vpop.f32.mrb[0].mxu0
      %v439 = vadd.f32 0.0, %v438
      %v440 = vpop.f32.mrb[0].mxu0
      %441 = vmatprep.mubr.f32.mxu0 0.0
      %442 = vmatmul.mubr.f32.gmra.mrb[0].mxu0 %v260
      %v443 = vpop.f32.mrb[0].mxu0
      %v444 = vadd.f32 0.0, %v443
      %v445 = vpop.f32.mrb[0].mxu0
      %446 = vmatprep.mubr.f32.mxu0 0.0
      %447 = vmatmul.mubr.f32.gmra.mrb[0].mxu0 %v263
      %v448 = vpop.f32.mrb[0].mxu0
      %v449 = vadd.f32 0.0, %v448
      %v450 = vpop.f32.mrb[0].mxu0
      %451 = vmatprep.mubr.f32.mxu0 0.0
      %452 = vmatmul.mubr.f32.gmra.mrb[0].mxu0 %v266
      %v453 = vpop.f32.mrb[0].mxu0
      %v454 = vadd.f32 0.0, %v453
      %v455 = vpop.f32.mrb[0].mxu0
      %456 = vmatprep.mubr.f32.mxu0 0.0
      %457 = vmatmul.mubr.f32.gmra.mrb[0].mxu0 %v269
      %v458 = vpop.f32.mrb[0].mxu0
      %v459 = vadd.f32 0.0, %v458
      %v460 = vpop.f32.mrb[0].mxu0
      %461 = vmatprep.mubr.f32.mxu0 0.0
      %462 = vmatmul.mubr.f32.gmra.mrb[0].mxu0 %v272
      %v463 = vpop.f32.mrb[0].mxu0
      %v464 = vadd.f32 0.0, %v463
      %v465 = vpop.f32.mrb[0].mxu0
      %466 = vmatprep.mubr.f32.mxu0 0.0
      %467 = vmatmul.mubr.f32.gmra.mrb[0].mxu0 %v275
      %v468 = vpop.f32.mrb[0].mxu0
      %v469 = vadd.f32 0.0, %v468
      %v470 = vpop.f32.mrb[0].mxu0
      %471 = vmatprep.mubr.f32.mxu0 0.0
      %472 = vmatmul.mubr.f32.gmra.mrb[0].mxu0 %v278
      %v473 = vpop.f32.mrb[0].mxu0
      %v474 = vadd.f32 0.0, %v473
      %v475 = vpop.f32.mrb[0].mxu0
      %476 = vmatprep.mubr.f32.mxu0 0.0
      %477 = vmatmul.mubr.f32.gmra.mrb[0].mxu0 %v281
      %v478 = vpop.f32.mrb[0].mxu0
      %v479 = vadd.f32 0.0, %v478
      %v480 = vpop.f32.mrb[0].mxu0
      %481 = vmatprep.mubr.f32.mxu0 0.0
      %482 = vmatmul.mubr.f32.gmra.mrb[0].mxu0 %v284
      %v483 = vpop.f32.mrb[0].mxu0
      %v484 = vadd.f32 0.0, %v483
      %v485 = vpop.f32.mrb[0].mxu0
      %486 = vmatprep.mubr.f32.mxu0 0.0
      %487 = vmatmul.mubr.f32.gmra.mrb[0].mxu0 %v287
      %v488 = vpop.f32.mrb[0].mxu0
      %v489 = vadd.f32 0.0, %v488
      %v490 = vpop.f32.mrb[0].mxu0
      %491 = vmatprep.mubr.f32.mxu0 0.0
      %492 = vmatmul.mubr.f32.gmra.mrb[0].mxu0 %v290
      %v493 = vpop.f32.mrb[0].mxu0
      %v494 = vadd.f32 0.0, %v493
      %v495 = vpop.f32.mrb[0].mxu0
      %496 = vmatprep.mubr.f32.mxu0 0.0
      %497 = vmatmul.mubr.f32.gmra.mrb[0].mxu0 %v293
      %v498 = vpop.f32.mrb[0].mxu0
      %v499 = vadd.f32 0.0, %v498
      %v500 = vpop.f32.mrb[0].mxu0
      %501 = vmatprep.mubr.f32.mxu0 0.0
      %502 = vmatmul.mubr.f32.gmra.mrb[0].mxu0 %v296
      %v503 = vpop.f32.mrb[0].mxu0
      %v504 = vadd.f32 0.0, %v503
      %v505 = vpop.f32.mrb[0].mxu0
      %506 = vmatprep.mubr.f32.mxu0 0.0
      %507 = vmatmul.mubr.f32.gmra.mrb[0].mxu0 %v299
      %v508 = vpop.f32.mrb[0].mxu0
      %v509 = vadd.f32 0.0, %v508
      %v510 = vpop.f32.mrb[0].mxu0
      %511 = vmatprep.mubr.f32.mxu0 0.0
      %512 = vmatmul.mubr.f32.gmra.mrb[0].mxu0 %v302
      %v513 = vpop.f32.mrb[0].mxu0
      %v514 = vadd.f32 0.0, %v513
      %v515 = vpop.f32.mrb[0].mxu0
      %516 = vmatprep.mubr.f32.mxu0 0.0
      %517 = vmatmul.mubr.f32.gmra.mrb[0].mxu0 %v305
      %v518 = vpop.f32.mrb[0].mxu0
      %v519 = vadd.f32 0.0, %v518
      %v520 = vpop.f32.mrb[0].mxu0
      %521 = vmatprep.mubr.f32.mxu0 0.0
      %522 = vmatmul.mubr.f32.gmra.mrb[0].mxu0 %v308
      %v523 = vpop.f32.mrb[0].mxu0
      %v524 = vadd.f32 0.0, %v523
      %v525 = vpop.f32.mrb[0].mxu0
      %526 = vmatprep.mubr.f32.mxu0 0.0
      %527 = vmatmul.mubr.f32.gmra.mrb[0].mxu0 %v311
      %v528 = vpop.f32.mrb[0].mxu0
      %v529 = vadd.f32 0.0, %v528
      %v530 = vpop.f32.mrb[0].mxu0
      %531 = vmatprep.mubr.f32.mxu0 0.0
      %532 = vmatmul.mubr.f32.gmra.mrb[0].mxu0 %v314
      %v533 = vpop.f32.mrb[0].mxu0
      %v534 = vadd.f32 0.0, %v533
      %v535 = vpop.f32.mrb[0].mxu0
      %536 = vmatprep.mubr.f32.mxu0 0.0
      %537 = vmatmul.mubr.f32.gmra.mrb[0].mxu0 %v317
      %v538 = vpop.f32.mrb[0].mxu0
      %v539 = vadd.f32 0.0, %v538
      %v540 = vpop.f32.mrb[0].mxu0
      %541 = vmatprep.mubr.f32.mxu0 0.0
      %542 = vmatmul.mubr.f32.gmra.mrb[0].mxu0 %v320
      %v543 = vpop.f32.mrb[0].mxu0
      %v544 = vadd.f32 0.0, %v543
      %v545 = vpop.f32.mrb[0].mxu0
      %546 = vmatprep.mubr.f32.mxu0 0.0
      %547 = vmatmul.mubr.f32.gmra.mrb[0].mxu0 %v323
      %v548 = vpop.f32.mrb[0].mxu0
      %v549 = vadd.f32 0.0, %v548
      %v550 = vpop.f32.mrb[0].mxu0
      %551 = vmatprep.mubr.f32.mxu0 0.0
      %552 = vmatmul.mubr.f32.gmra.mrb[0].mxu0 %v326
      %v553 = vpop.f32.mrb[0].mxu0
      %v554 = vadd.f32 0.0, %v553
      %v555 = vpop.f32.mrb[0].mxu0
      %556 = vdwg.mxu0
      %vm557 = vcmask 130048
      %558 = vst.msk [vmem:[#allocation2] sm:$0xff] %vm557, 0.0
      %559 = vst.msk [vmem:[#allocation2 + $0x8] sm:$0xff] %vm557, 0.0
      %vm560 = vcmask 123904
      %561 = vst.msk [vmem:[#allocation2 + $0x10] sm:$0x3] %vm560, 0.0
      %562 = vst.msk [vmem:[#allocation2 + $0x18] sm:$0xff] %vm557, 0.0
      %563 = vst.msk [vmem:[#allocation2 + $0x20] sm:$0xff] %vm557, 0.0
      %564 = vst.msk [vmem:[#allocation2 + $0x28] sm:$0x3] %vm560, 0.0
      %565 = vst.msk [vmem:[#allocation2 + $0x30] sm:$0xff] %vm557, 0.0
      %566 = vst.msk [vmem:[#allocation2 + $0x38] sm:$0xff] %vm557, 0.0
      %567 = vst.msk [vmem:[#allocation2 + $0x40] sm:$0x3] %vm560, 0.0
      %568 = vst.msk [vmem:[#allocation2 + $0x48] sm:$0xff] %vm557, 0.0
      %569 = vst.msk [vmem:[#allocation2 + $0x50] sm:$0xff] %vm557, 0.0
      %570 = vst.msk [vmem:[#allocation2 + $0x58] sm:$0x3] %vm560, 0.0
      %571 = vst.msk [vmem:[#allocation2 + $0x60] sm:$0xff] %vm557, 0.0
      %572 = vst.msk [vmem:[#allocation2 + $0x68] sm:$0xff] %vm557, 0.0
      %573 = vst.msk [vmem:[#allocation2 + $0x70] sm:$0x3] %vm560, 0.0
      %574 = vst.msk [vmem:[#allocation2 + $0x78] sm:$0xff] %vm557, 0.0
      %575 = vst.msk [vmem:[#allocation2 + $0x80] sm:$0xff] %vm557, 0.0
      %576 = vst.msk [vmem:[#allocation2 + $0x88] sm:$0x3] %vm560, 0.0
      %577 = vst.msk [vmem:[#allocation2 + $0x90] sm:$0xff] %vm557, 0.0
      %578 = vst.msk [vmem:[#allocation2 + $0x98] sm:$0xff] %vm557, 0.0
      %579 = vst.msk [vmem:[#allocation2 + $0xa0] sm:$0x3] %vm560, 0.0
      %580 = vst.msk [vmem:[#allocation2 + $0xa8] sm:$0xff] %vm557, 0.0
      %581 = vst.msk [vmem:[#allocation2 + $0xb0] sm:$0xff] %vm557, 0.0
      %582 = vst.msk [vmem:[#allocation2 + $0xb8] sm:$0x3] %vm560, 0.0
      %583 = vst.msk [vmem:[#allocation2 + $0xc0] sm:$0xff] %vm557, 0.0
      %584 = vst.msk [vmem:[#allocation2 + $0xc8] sm:$0xff] %vm557, 0.0
      %585 = vst.msk [vmem:[#allocation2 + $0xd0] sm:$0x3] %vm560, 0.0
      %586 = vst.msk [vmem:[#allocation2 + $0xd8] sm:$0xff] %vm557, 0.0
      %587 = vst.msk [vmem:[#allocation2 + $0xe0] sm:$0xff] %vm557, 0.0
      %588 = vst.msk [vmem:[#allocation2 + $0xe8] sm:$0x3] %vm560, 0.0
      %589 = vst.msk [vmem:[#allocation2 + $0xf0] sm:$0xff] %vm557, 0.0
      %590 = vst.msk [vmem:[#allocation2 + $0xf8] sm:$0xff] %vm557, 0.0
      %591 = vst.msk [vmem:[#allocation2 + $0x100] sm:$0x3] %vm560, 0.0
      %592 = vst.msk [vmem:[#allocation2 + $0x108] sm:$0xff] %vm557, 0.0
      %593 = vst.msk [vmem:[#allocation2 + $0x110] sm:$0xff] %vm557, 0.0
      %594 = vst.msk [vmem:[#allocation2 + $0x118] sm:$0x3] %vm560, 0.0
      %595 = vst.msk [vmem:[#allocation2 + $0x120] sm:$0xff] %vm557, 0.0
      %596 = vst.msk [vmem:[#allocation2 + $0x128] sm:$0xff] %vm557, 0.0
      %597 = vst.msk [vmem:[#allocation2 + $0x130] sm:$0x3] %vm560, 0.0
      %598 = vst.msk [vmem:[#allocation2 + $0x138] sm:$0xff] %vm557, 0.0
      %599 = vst.msk [vmem:[#allocation2 + $0x140] sm:$0xff] %vm557, 0.0
      %600 = vst.msk [vmem:[#allocation2 + $0x148] sm:$0x3] %vm560, 0.0
      %601 = vst.msk [vmem:[#allocation2 + $0x150] sm:$0xff] %vm557, 0.0
      %602 = vst.msk [vmem:[#allocation2 + $0x158] sm:$0xff] %vm557, 0.0
      %603 = vst.msk [vmem:[#allocation2 + $0x160] sm:$0x3] %vm560, 0.0
      %604 = vst.msk [vmem:[#allocation2 + $0x168] sm:$0xff] %vm557, 0.0
      %605 = vst.msk [vmem:[#allocation2 + $0x170] sm:$0xff] %vm557, 0.0
      %606 = vst.msk [vmem:[#allocation2 + $0x178] sm:$0x3] %vm560, 0.0
      %607 = vst.msk [vmem:[#allocation2 + $0x180] sm:$0xff] %vm557, 0.0
      %608 = vst.msk [vmem:[#allocation2 + $0x188] sm:$0xff] %vm557, 0.0
      %609 = vst.msk [vmem:[#allocation2 + $0x190] sm:$0x3] %vm560, 0.0
      %610 = vst.msk [vmem:[#allocation2 + $0x198] sm:$0xff] %vm557, 0.0
      %611 = vst.msk [vmem:[#allocation2 + $0x1a0] sm:$0xff] %vm557, 0.0
      %612 = vst.msk [vmem:[#allocation2 + $0x1a8] sm:$0x3] %vm560, 0.0
      %s613 = scalar_lea.vmem [#allocation2], 24
      %614 = vst.msk [vmem:[%s613 + $0x1] sm:$0xff] %vm557, %v399
      %615 = vst.msk [vmem:[%s613 + $0x9] sm:$0xff] %vm557, %v404
      %616 = vst.msk [vmem:[%s613 + $0x19] sm:$0xff] %vm557, %v409
      %617 = vst.msk [vmem:[%s613 + $0x21] sm:$0xff] %vm557, %v414
      %618 = vst.msk [vmem:[%s613 + $0x31] sm:$0xff] %vm557, %v419
      %619 = vst.msk [vmem:[%s613 + $0x39] sm:$0xff] %vm557, %v424
      %620 = vst.msk [vmem:[%s613 + $0x49] sm:$0xff] %vm557, %v429
      %621 = vst.msk [vmem:[%s613 + $0x51] sm:$0xff] %vm557, %v434
      %622 = vst.msk [vmem:[%s613 + $0x61] sm:$0xff] %vm557, %v439
      %623 = vst.msk [vmem:[%s613 + $0x69] sm:$0xff] %vm557, %v444
      %624 = vst.msk [vmem:[%s613 + $0x79] sm:$0xff] %vm557, %v449
      %625 = vst.msk [vmem:[%s613 + $0x81] sm:$0xff] %vm557, %v454
      %626 = vst.msk [vmem:[%s613 + $0x91] sm:$0xff] %vm557, %v459
      %627 = vst.msk [vmem:[%s613 + $0x99] sm:$0xff] %vm557, %v464
      %628 = vst.msk [vmem:[%s613 + $0xa9] sm:$0xff] %vm557, %v469
      %629 = vst.msk [vmem:[%s613 + $0xb1] sm:$0xff] %vm557, %v474
      %630 = vst.msk [vmem:[%s613 + $0xc1] sm:$0xff] %vm557, %v479
      %631 = vst.msk [vmem:[%s613 + $0xc9] sm:$0xff] %vm557, %v484
      %632 = vst.msk [vmem:[%s613 + $0xd9] sm:$0xff] %vm557, %v489
      %633 = vst.msk [vmem:[%s613 + $0xe1] sm:$0xff] %vm557, %v494
      %634 = vst.msk [vmem:[%s613 + $0xf1] sm:$0xff] %vm557, %v499
      %635 = vst.msk [vmem:[%s613 + $0xf9] sm:$0xff] %vm557, %v504
      %636 = vst.msk [vmem:[%s613 + $0x109] sm:$0xff] %vm557, %v509
      %637 = vst.msk [vmem:[%s613 + $0x111] sm:$0xff] %vm557, %v514
      %638 = vst.msk [vmem:[%s613 + $0x121] sm:$0xff] %vm557, %v519
      %639 = vst.msk [vmem:[%s613 + $0x129] sm:$0xff] %vm557, %v524
      %640 = vst.msk [vmem:[%s613 + $0x139] sm:$0xff] %vm557, %v529
      %641 = vst.msk [vmem:[%s613 + $0x141] sm:$0xff] %vm557, %v534
      %642 = vst.msk [vmem:[%s613 + $0x151] sm:$0xff] %vm557, %v539
      %643 = vst.msk [vmem:[%s613 + $0x159] sm:$0xff] %vm557, %v544
      %644 = vst.msk [vmem:[%s613 + $0x169] sm:$0xff] %vm557, %v549
      %645 = vst.msk [vmem:[%s613 + $0x171] sm:$0xff] %vm557, %v554
      %v646 = vld [vmem:[%s2] sm:$0x7]
      %v647 = vld [vmem:[%s2 + $0x4] sm:$0x7]
      %v648 = vld [vmem:[%s2 + $0x8] sm:$0x7]
      %v649 = vld [vmem:[#allocation2] sm:$0xff]
      %v650 = vld [vmem:[#allocation2 + $0x8] sm:$0xff]
      %v651 = vld [vmem:[#allocation2 + $0x18] sm:$0xff]
      %v652 = vld [vmem:[#allocation2 + $0x20] sm:$0xff]
      %v653 = vld [vmem:[#allocation2 + $0x30] sm:$0xff]
      %v654 = vld [vmem:[#allocation2 + $0x38] sm:$0xff]
      %v655 = vld [vmem:[#allocation2 + $0x48] sm:$0xff]
      %v656 = vld [vmem:[#allocation2 + $0x50] sm:$0xff]
      %v657 = vld [vmem:[#allocation2 + $0x60] sm:$0xff]
      %v658 = vld [vmem:[#allocation2 + $0x68] sm:$0xff]
      %v659 = vld [vmem:[#allocation2 + $0x78] sm:$0xff]
      %v660 = vld [vmem:[#allocation2 + $0x80] sm:$0xff]
      %v661 = vld [vmem:[#allocation2 + $0x90] sm:$0xff]
      %v662 = vld [vmem:[#allocation2 + $0x98] sm:$0xff]
      %v663 = vld [vmem:[#allocation2 + $0xa8] sm:$0xff]
      %v664 = vld [vmem:[#allocation2 + $0xb0] sm:$0xff]
      %v665 = vld [vmem:[#allocation2 + $0xc0] sm:$0xff]
      %v666 = vld [vmem:[#allocation2 + $0xc8] sm:$0xff]
      %v667 = vld [vmem:[#allocation2 + $0xd8] sm:$0xff]
      %v668 = vld [vmem:[#allocation2 + $0xe0] sm:$0xff]
      %v669 = vld [vmem:[#allocation2 + $0xf0] sm:$0xff]
      %v670 = vld [vmem:[#allocation2 + $0xf8] sm:$0xff]
      %v671 = vld [vmem:[#allocation2 + $0x108] sm:$0xff]
      %v672 = vld [vmem:[#allocation2 + $0x110] sm:$0xff]
      %v673 = vld [vmem:[#allocation2 + $0x120] sm:$0xff]
      %v674 = vld [vmem:[#allocation2 + $0x128] sm:$0xff]
      %v675 = vld [vmem:[#allocation2 + $0x138] sm:$0xff]
      %v676 = vld [vmem:[#allocation2 + $0x140] sm:$0xff]
      %v677 = vld [vmem:[#allocation2 + $0x150] sm:$0xff]
      %v678 = vld [vmem:[#allocation2 + $0x158] sm:$0xff]
      %v679 = vld [vmem:[#allocation2 + $0x168] sm:$0xff]
      %v680 = vld [vmem:[#allocation2 + $0x170] sm:$0xff]
      %v681 = vlaneseq
      %v682 = vshrl.u32 %v681, 7
      %v683 = vsub.s32 0, %v682
      %v684 = vrot.slane %v646, %v683
      %v685 = vmul.f32 %v649, %v684
      %v686 = vmul.f32 %v650, %v684
      %v687 = vmul.f32 %v651, %v684
      %v688 = vmul.f32 %v652, %v684
      %v689 = vmul.f32 %v653, %v684
      %v690 = vmul.f32 %v654, %v684
      %v691 = vmul.f32 %v655, %v684
      %v692 = vmul.f32 %v656, %v684
      %v693 = vmul.f32 %v657, %v684
      %v694 = vmul.f32 %v658, %v684
      %v695 = vmul.f32 %v659, %v684
      %v696 = vmul.f32 %v660, %v684
      %v697 = vmul.f32 %v661, %v684
      %v698 = vmul.f32 %v662, %v684
      %v699 = vmul.f32 %v663, %v684
      %v700 = vmul.f32 %v664, %v684
      %v701 = vmul.f32 %v665, %v684
      %v702 = vmul.f32 %v666, %v684
      %v703 = vmul.f32 %v667, %v684
      %v704 = vmul.f32 %v668, %v684
      %v705 = vmul.f32 %v669, %v684
      %v706 = vmul.f32 %v670, %v684
      %v707 = vmul.f32 %v671, %v684
      %v708 = vmul.f32 %v672, %v684
      %v709 = vmul.f32 %v673, %v684
      %v710 = vmul.f32 %v674, %v684
      %v711 = vmul.f32 %v675, %v684
      %v712 = vmul.f32 %v676, %v684
      %v713 = vmul.f32 %v677, %v684
      %v714 = vmul.f32 %v678, %v684
      %v715 = vmul.f32 %v679, %v684
      %v716 = vmul.f32 %v680, %v684
      %v717 = vadd.f32 %v685, 0.0
      %v718 = vadd.f32 %v686, 0.0
      %v719 = vadd.f32 %v687, 0.0
      %v720 = vadd.f32 %v688, 0.0
      %v721 = vadd.f32 %v689, 0.0
      %v722 = vadd.f32 %v690, 0.0
      %v723 = vadd.f32 %v691, 0.0
      %v724 = vadd.f32 %v692, 0.0
      %v725 = vadd.f32 %v693, 0.0
      %v726 = vadd.f32 %v694, 0.0
      %v727 = vadd.f32 %v695, 0.0
      %v728 = vadd.f32 %v696, 0.0
      %v729 = vadd.f32 %v697, 0.0
      %v730 = vadd.f32 %v698, 0.0
      %v731 = vadd.f32 %v699, 0.0
      %v732 = vadd.f32 %v700, 0.0
      %v733 = vadd.f32 %v701, 0.0
      %v734 = vadd.f32 %v702, 0.0
      %v735 = vadd.f32 %v703, 0.0
      %v736 = vadd.f32 %v704, 0.0
      %v737 = vadd.f32 %v705, 0.0
      %v738 = vadd.f32 %v706, 0.0
      %v739 = vadd.f32 %v707, 0.0
      %v740 = vadd.f32 %v708, 0.0
      %v741 = vadd.f32 %v709, 0.0
      %v742 = vadd.f32 %v710, 0.0
      %v743 = vadd.f32 %v711, 0.0
      %v744 = vadd.f32 %v712, 0.0
      %v745 = vadd.f32 %v713, 0.0
      %v746 = vadd.f32 %v714, 0.0
      %v747 = vadd.f32 %v715, 0.0
      %v748 = vadd.f32 %v716, 0.0
      %v749 = vld [vmem:[#allocation2 + $0x1] sm:$0xff]
      %v750 = vld [vmem:[#allocation2 + $0x9] sm:$0xff]
      %v751 = vld [vmem:[#allocation2 + $0x19] sm:$0xff]
      %v752 = vld [vmem:[#allocation2 + $0x21] sm:$0xff]
      %v753 = vld [vmem:[#allocation2 + $0x31] sm:$0xff]
      %v754 = vld [vmem:[#allocation2 + $0x39] sm:$0xff]
      %v755 = vld [vmem:[#allocation2 + $0x49] sm:$0xff]
      %v756 = vld [vmem:[#allocation2 + $0x51] sm:$0xff]
      %v757 = vld [vmem:[#allocation2 + $0x61] sm:$0xff]
      %v758 = vld [vmem:[#allocation2 + $0x69] sm:$0xff]
      %v759 = vld [vmem:[#allocation2 + $0x79] sm:$0xff]
      %v760 = vld [vmem:[#allocation2 + $0x81] sm:$0xff]
      %v761 = vld [vmem:[#allocation2 + $0x91] sm:$0xff]
      %v762 = vld [vmem:[#allocation2 + $0x99] sm:$0xff]
      %v763 = vld [vmem:[#allocation2 + $0xa9] sm:$0xff]
      %v764 = vld [vmem:[#allocation2 + $0xb1] sm:$0xff]
      %v765 = vld [vmem:[#allocation2 + $0xc1] sm:$0xff]
      %v766 = vld [vmem:[#allocation2 + $0xc9] sm:$0xff]
      %v767 = vld [vmem:[#allocation2 + $0xd9] sm:$0xff]
      %v768 = vld [vmem:[#allocation2 + $0xe1] sm:$0xff]
      %v769 = vld [vmem:[#allocation2 + $0xf1] sm:$0xff]
      %v770 = vld [vmem:[#allocation2 + $0xf9] sm:$0xff]
      %v771 = vld [vmem:[#allocation2 + $0x109] sm:$0xff]
      %v772 = vld [vmem:[#allocation2 + $0x111] sm:$0xff]
      %v773 = vld [vmem:[#allocation2 + $0x121] sm:$0xff]
      %v774 = vld [vmem:[#allocation2 + $0x129] sm:$0xff]
      %v775 = vld [vmem:[#allocation2 + $0x139] sm:$0xff]
      %v776 = vld [vmem:[#allocation2 + $0x141] sm:$0xff]
      %v777 = vld [vmem:[#allocation2 + $0x151] sm:$0xff]
      %v778 = vld [vmem:[#allocation2 + $0x159] sm:$0xff]
      %v779 = vld [vmem:[#allocation2 + $0x169] sm:$0xff]
      %v780 = vld [vmem:[#allocation2 + $0x171] sm:$0xff]
      %v781 = vlaneseq
      %v782 = vshrl.u32 %v781, 7
      %v783 = vsub.s32 1, %v782
      %v784 = vrot.slane %v646, %v783
      %v785 = vmul.f32 %v749, %v784
      %v786 = vmul.f32 %v750, %v784
      %v787 = vmul.f32 %v751, %v784
      %v788 = vmul.f32 %v752, %v784
      %v789 = vmul.f32 %v753, %v784
      %v790 = vmul.f32 %v754, %v784
      %v791 = vmul.f32 %v755, %v784
      %v792 = vmul.f32 %v756, %v784
      %v793 = vmul.f32 %v757, %v784
      %v794 = vmul.f32 %v758, %v784
      %v795 = vmul.f32 %v759, %v784
      %v796 = vmul.f32 %v760, %v784
      %v797 = vmul.f32 %v761, %v784
      %v798 = vmul.f32 %v762, %v784
      %v799 = vmul.f32 %v763, %v784
      %v800 = vmul.f32 %v764, %v784
      %v801 = vmul.f32 %v765, %v784
      %v802 = vmul.f32 %v766, %v784
      %v803 = vmul.f32 %v767, %v784
      %v804 = vmul.f32 %v768, %v784
      %v805 = vmul.f32 %v769, %v784
      %v806 = vmul.f32 %v770, %v784
      %v807 = vmul.f32 %v771, %v784
      %v808 = vmul.f32 %v772, %v784
      %v809 = vmul.f32 %v773, %v784
      %v810 = vmul.f32 %v774, %v784
      %v811 = vmul.f32 %v775, %v784
      %v812 = vmul.f32 %v776, %v784
      %v813 = vmul.f32 %v777, %v784
      %v814 = vmul.f32 %v778, %v784
      %v815 = vmul.f32 %v779, %v784
      %v816 = vmul.f32 %v780, %v784
      %v817 = vadd.f32 %v717, %v785
      %v818 = vadd.f32 %v718, %v786
      %v819 = vadd.f32 %v719, %v787
      %v820 = vadd.f32 %v720, %v788
      %v821 = vadd.f32 %v721, %v789
      %v822 = vadd.f32 %v722, %v790
      %v823 = vadd.f32 %v723, %v791
      %v824 = vadd.f32 %v724, %v792
      %v825 = vadd.f32 %v725, %v793
      %v826 = vadd.f32 %v726, %v794
      %v827 = vadd.f32 %v727, %v795
      %v828 = vadd.f32 %v728, %v796
      %v829 = vadd.f32 %v729, %v797
      %v830 = vadd.f32 %v730, %v798
      %v831 = vadd.f32 %v731, %v799
      %v832 = vadd.f32 %v732, %v800
      %v833 = vadd.f32 %v733, %v801
      %v834 = vadd.f32 %v734, %v802
      %v835 = vadd.f32 %v735, %v803
      %v836 = vadd.f32 %v736, %v804
      %v837 = vadd.f32 %v737, %v805
      %v838 = vadd.f32 %v738, %v806
      %v839 = vadd.f32 %v739, %v807
      %v840 = vadd.f32 %v740, %v808
      %v841 = vadd.f32 %v741, %v809
      %v842 = vadd.f32 %v742, %v810
      %v843 = vadd.f32 %v743, %v811
      %v844 = vadd.f32 %v744, %v812
      %v845 = vadd.f32 %v745, %v813
      %v846 = vadd.f32 %v746, %v814
      %v847 = vadd.f32 %v747, %v815
      %v848 = vadd.f32 %v748, %v816
      %v849 = vld [vmem:[#allocation2 + $0x2] sm:$0xff]
      %v850 = vld [vmem:[#allocation2 + $0xa] sm:$0xff]
      %v851 = vld [vmem:[#allocation2 + $0x1a] sm:$0xff]
      %v852 = vld [vmem:[#allocation2 + $0x22] sm:$0xff]
      %v853 = vld [vmem:[#allocation2 + $0x32] sm:$0xff]
      %v854 = vld [vmem:[#allocation2 + $0x3a] sm:$0xff]
      %v855 = vld [vmem:[#allocation2 + $0x4a] sm:$0xff]
      %v856 = vld [vmem:[#allocation2 + $0x52] sm:$0xff]
      %v857 = vld [vmem:[#allocation2 + $0x62] sm:$0xff]
      %v858 = vld [vmem:[#allocation2 + $0x6a] sm:$0xff]
      %v859 = vld [vmem:[#allocation2 + $0x7a] sm:$0xff]
      %v860 = vld [vmem:[#allocation2 + $0x82] sm:$0xff]
      %v861 = vld [vmem:[#allocation2 + $0x92] sm:$0xff]
      %v862 = vld [vmem:[#allocation2 + $0x9a] sm:$0xff]
      %v863 = vld [vmem:[#allocation2 + $0xaa] sm:$0xff]
      %v864 = vld [vmem:[#allocation2 + $0xb2] sm:$0xff]
      %v865 = vld [vmem:[#allocation2 + $0xc2] sm:$0xff]
      %v866 = vld [vmem:[#allocation2 + $0xca] sm:$0xff]
      %v867 = vld [vmem:[#allocation2 + $0xda] sm:$0xff]
      %v868 = vld [vmem:[#allocation2 + $0xe2] sm:$0xff]
      %v869 = vld [vmem:[#allocation2 + $0xf2] sm:$0xff]
      %v870 = vld [vmem:[#allocation2 + $0xfa] sm:$0xff]
      %v871 = vld [vmem:[#allocation2 + $0x10a] sm:$0xff]
      %v872 = vld [vmem:[#allocation2 + $0x112] sm:$0xff]
      %v873 = vld [vmem:[#allocation2 + $0x122] sm:$0xff]
      %v874 = vld [vmem:[#allocation2 + $0x12a] sm:$0xff]
      %v875 = vld [vmem:[#allocation2 + $0x13a] sm:$0xff]
      %v876 = vld [vmem:[#allocation2 + $0x142] sm:$0xff]
      %v877 = vld [vmem:[#allocation2 + $0x152] sm:$0xff]
      %v878 = vld [vmem:[#allocation2 + $0x15a] sm:$0xff]
      %v879 = vld [vmem:[#allocation2 + $0x16a] sm:$0xff]
      %v880 = vld [vmem:[#allocation2 + $0x172] sm:$0xff]
      %v881 = vlaneseq
      %v882 = vshrl.u32 %v881, 7
      %v883 = vsub.s32 2, %v882
      %v884 = vrot.slane %v646, %v883
      %v885 = vmul.f32 %v849, %v884
      %v886 = vmul.f32 %v850, %v884
      %v887 = vmul.f32 %v851, %v884
      %v888 = vmul.f32 %v852, %v884
      %v889 = vmul.f32 %v853, %v884
      %v890 = vmul.f32 %v854, %v884
      %v891 = vmul.f32 %v855, %v884
      %v892 = vmul.f32 %v856, %v884
      %v893 = vmul.f32 %v857, %v884
      %v894 = vmul.f32 %v858, %v884
      %v895 = vmul.f32 %v859, %v884
      %v896 = vmul.f32 %v860, %v884
      %v897 = vmul.f32 %v861, %v884
      %v898 = vmul.f32 %v862, %v884
      %v899 = vmul.f32 %v863, %v884
      %v900 = vmul.f32 %v864, %v884
      %v901 = vmul.f32 %v865, %v884
      %v902 = vmul.f32 %v866, %v884
      %v903 = vmul.f32 %v867, %v884
      %v904 = vmul.f32 %v868, %v884
      %v905 = vmul.f32 %v869, %v884
      %v906 = vmul.f32 %v870, %v884
      %v907 = vmul.f32 %v871, %v884
      %v908 = vmul.f32 %v872, %v884
      %v909 = vmul.f32 %v873, %v884
      %v910 = vmul.f32 %v874, %v884
      %v911 = vmul.f32 %v875, %v884
      %v912 = vmul.f32 %v876, %v884
      %v913 = vmul.f32 %v877, %v884
      %v914 = vmul.f32 %v878, %v884
      %v915 = vmul.f32 %v879, %v884
      %v916 = vmul.f32 %v880, %v884
      %v917 = vadd.f32 %v817, %v885
      %v918 = vadd.f32 %v818, %v886
      %v919 = vadd.f32 %v819, %v887
      %v920 = vadd.f32 %v820, %v888
      %v921 = vadd.f32 %v821, %v889
      %v922 = vadd.f32 %v822, %v890
      %v923 = vadd.f32 %v823, %v891
      %v924 = vadd.f32 %v824, %v892
      %v925 = vadd.f32 %v825, %v893
      %v926 = vadd.f32 %v826, %v894
      %v927 = vadd.f32 %v827, %v895
      %v928 = vadd.f32 %v828, %v896
      %v929 = vadd.f32 %v829, %v897
      %v930 = vadd.f32 %v830, %v898
      %v931 = vadd.f32 %v831, %v899
      %v932 = vadd.f32 %v832, %v900
      %v933 = vadd.f32 %v833, %v901
      %v934 = vadd.f32 %v834, %v902
      %v935 = vadd.f32 %v835, %v903
      %v936 = vadd.f32 %v836, %v904
      %v937 = vadd.f32 %v837, %v905
      %v938 = vadd.f32 %v838, %v906
      %v939 = vadd.f32 %v839, %v907
      %v940 = vadd.f32 %v840, %v908
      %v941 = vadd.f32 %v841, %v909
      %v942 = vadd.f32 %v842, %v910
      %v943 = vadd.f32 %v843, %v911
      %v944 = vadd.f32 %v844, %v912
      %v945 = vadd.f32 %v845, %v913
      %v946 = vadd.f32 %v846, %v914
      %v947 = vadd.f32 %v847, %v915
      %v948 = vadd.f32 %v848, %v916
      %v949 = vld [vmem:[%s613] sm:$0xff]
      %v950 = vld [vmem:[%s613 + $0x8] sm:$0xff]
      %v951 = vld [vmem:[%s613 + $0x18] sm:$0xff]
      %v952 = vld [vmem:[%s613 + $0x20] sm:$0xff]
      %v953 = vld [vmem:[%s613 + $0x30] sm:$0xff]
      %v954 = vld [vmem:[%s613 + $0x38] sm:$0xff]
      %v955 = vld [vmem:[%s613 + $0x48] sm:$0xff]
      %v956 = vld [vmem:[%s613 + $0x50] sm:$0xff]
      %v957 = vld [vmem:[%s613 + $0x60] sm:$0xff]
      %v958 = vld [vmem:[%s613 + $0x68] sm:$0xff]
      %v959 = vld [vmem:[%s613 + $0x78] sm:$0xff]
      %v960 = vld [vmem:[%s613 + $0x80] sm:$0xff]
      %v961 = vld [vmem:[%s613 + $0x90] sm:$0xff]
      %v962 = vld [vmem:[%s613 + $0x98] sm:$0xff]
      %v963 = vld [vmem:[%s613 + $0xa8] sm:$0xff]
      %v964 = vld [vmem:[%s613 + $0xb0] sm:$0xff]
      %v965 = vld [vmem:[%s613 + $0xc0] sm:$0xff]
      %v966 = vld [vmem:[%s613 + $0xc8] sm:$0xff]
      %v967 = vld [vmem:[%s613 + $0xd8] sm:$0xff]
      %v968 = vld [vmem:[%s613 + $0xe0] sm:$0xff]
      %v969 = vld [vmem:[%s613 + $0xf0] sm:$0xff]
      %v970 = vld [vmem:[%s613 + $0xf8] sm:$0xff]
      %v971 = vld [vmem:[%s613 + $0x108] sm:$0xff]
      %v972 = vld [vmem:[%s613 + $0x110] sm:$0xff]
      %v973 = vld [vmem:[%s613 + $0x120] sm:$0xff]
      %v974 = vld [vmem:[%s613 + $0x128] sm:$0xff]
      %v975 = vld [vmem:[%s613 + $0x138] sm:$0xff]
      %v976 = vld [vmem:[%s613 + $0x140] sm:$0xff]
      %v977 = vld [vmem:[%s613 + $0x150] sm:$0xff]
      %v978 = vld [vmem:[%s613 + $0x158] sm:$0xff]
      %v979 = vld [vmem:[%s613 + $0x168] sm:$0xff]
      %v980 = vld [vmem:[%s613 + $0x170] sm:$0xff]
      %v981 = vlaneseq
      %v982 = vshrl.u32 %v981, 7
      %v983 = vsub.s32 0, %v982
      %v984 = vrot.slane %v647, %v983
      %v985 = vmul.f32 %v949, %v984
      %v986 = vmul.f32 %v950, %v984
      %v987 = vmul.f32 %v951, %v984
      %v988 = vmul.f32 %v952, %v984
      %v989 = vmul.f32 %v953, %v984
      %v990 = vmul.f32 %v954, %v984
      %v991 = vmul.f32 %v955, %v984
      %v992 = vmul.f32 %v956, %v984
      %v993 = vmul.f32 %v957, %v984
      %v994 = vmul.f32 %v958, %v984
      %v995 = vmul.f32 %v959, %v984
      %v996 = vmul.f32 %v960, %v984
      %v997 = vmul.f32 %v961, %v984
      %v998 = vmul.f32 %v962, %v984
      %v999 = vmul.f32 %v963, %v984
      %v1000 = vmul.f32 %v964, %v984
      %v1001 = vmul.f32 %v965, %v984
      %v1002 = vmul.f32 %v966, %v984
      %v1003 = vmul.f32 %v967, %v984
      %v1004 = vmul.f32 %v968, %v984
      %v1005 = vmul.f32 %v969, %v984
      %v1006 = vmul.f32 %v970, %v984
      %v1007 = vmul.f32 %v971, %v984
      %v1008 = vmul.f32 %v972, %v984
      %v1009 = vmul.f32 %v973, %v984
      %v1010 = vmul.f32 %v974, %v984
      %v1011 = vmul.f32 %v975, %v984
      %v1012 = vmul.f32 %v976, %v984
      %v1013 = vmul.f32 %v977, %v984
      %v1014 = vmul.f32 %v978, %v984
      %v1015 = vmul.f32 %v979, %v984
      %v1016 = vmul.f32 %v980, %v984
      %v1017 = vadd.f32 %v917, %v985
      %v1018 = vadd.f32 %v918, %v986
      %v1019 = vadd.f32 %v919, %v987
      %v1020 = vadd.f32 %v920, %v988
      %v1021 = vadd.f32 %v921, %v989
      %v1022 = vadd.f32 %v922, %v990
      %v1023 = vadd.f32 %v923, %v991
      %v1024 = vadd.f32 %v924, %v992
      %v1025 = vadd.f32 %v925, %v993
      %v1026 = vadd.f32 %v926, %v994
      %v1027 = vadd.f32 %v927, %v995
      %v1028 = vadd.f32 %v928, %v996
      %v1029 = vadd.f32 %v929, %v997
      %v1030 = vadd.f32 %v930, %v998
      %v1031 = vadd.f32 %v931, %v999
      %v1032 = vadd.f32 %v932, %v1000
      %v1033 = vadd.f32 %v933, %v1001
      %v1034 = vadd.f32 %v934, %v1002
      %v1035 = vadd.f32 %v935, %v1003
      %v1036 = vadd.f32 %v936, %v1004
      %v1037 = vadd.f32 %v937, %v1005
      %v1038 = vadd.f32 %v938, %v1006
      %v1039 = vadd.f32 %v939, %v1007
      %v1040 = vadd.f32 %v940, %v1008
      %v1041 = vadd.f32 %v941, %v1009
      %v1042 = vadd.f32 %v942, %v1010
      %v1043 = vadd.f32 %v943, %v1011
      %v1044 = vadd.f32 %v944, %v1012
      %v1045 = vadd.f32 %v945, %v1013
      %v1046 = vadd.f32 %v946, %v1014
      %v1047 = vadd.f32 %v947, %v1015
      %v1048 = vadd.f32 %v948, %v1016
      %v1049 = vld [vmem:[%s613 + $0x1] sm:$0xff]
      %v1050 = vld [vmem:[%s613 + $0x9] sm:$0xff]
      %v1051 = vld [vmem:[%s613 + $0x19] sm:$0xff]
      %v1052 = vld [vmem:[%s613 + $0x21] sm:$0xff]
      %v1053 = vld [vmem:[%s613 + $0x31] sm:$0xff]
      %v1054 = vld [vmem:[%s613 + $0x39] sm:$0xff]
      %v1055 = vld [vmem:[%s613 + $0x49] sm:$0xff]
      %v1056 = vld [vmem:[%s613 + $0x51] sm:$0xff]
      %v1057 = vld [vmem:[%s613 + $0x61] sm:$0xff]
      %v1058 = vld [vmem:[%s613 + $0x69] sm:$0xff]
      %v1059 = vld [vmem:[%s613 + $0x79] sm:$0xff]
      %v1060 = vld [vmem:[%s613 + $0x81] sm:$0xff]
      %v1061 = vld [vmem:[%s613 + $0x91] sm:$0xff]
      %v1062 = vld [vmem:[%s613 + $0x99] sm:$0xff]
      %v1063 = vld [vmem:[%s613 + $0xa9] sm:$0xff]
      %v1064 = vld [vmem:[%s613 + $0xb1] sm:$0xff]
      %v1065 = vld [vmem:[%s613 + $0xc1] sm:$0xff]
      %v1066 = vld [vmem:[%s613 + $0xc9] sm:$0xff]
      %v1067 = vld [vmem:[%s613 + $0xd9] sm:$0xff]
      %v1068 = vld [vmem:[%s613 + $0xe1] sm:$0xff]
      %v1069 = vld [vmem:[%s613 + $0xf1] sm:$0xff]
      %v1070 = vld [vmem:[%s613 + $0xf9] sm:$0xff]
      %v1071 = vld [vmem:[%s613 + $0x109] sm:$0xff]
      %v1072 = vld [vmem:[%s613 + $0x111] sm:$0xff]
      %v1073 = vld [vmem:[%s613 + $0x121] sm:$0xff]
      %v1074 = vld [vmem:[%s613 + $0x129] sm:$0xff]
      %v1075 = vld [vmem:[%s613 + $0x139] sm:$0xff]
      %v1076 = vld [vmem:[%s613 + $0x141] sm:$0xff]
      %v1077 = vld [vmem:[%s613 + $0x151] sm:$0xff]
      %v1078 = vld [vmem:[%s613 + $0x159] sm:$0xff]
      %v1079 = vld [vmem:[%s613 + $0x169] sm:$0xff]
      %v1080 = vld [vmem:[%s613 + $0x171] sm:$0xff]
      %v1081 = vlaneseq
      %v1082 = vshrl.u32 %v1081, 7
      %v1083 = vsub.s32 1, %v1082
      %v1084 = vrot.slane %v647, %v1083
      %v1085 = vmul.f32 %v1049, %v1084
      %v1086 = vmul.f32 %v1050, %v1084
      %v1087 = vmul.f32 %v1051, %v1084
      %v1088 = vmul.f32 %v1052, %v1084
      %v1089 = vmul.f32 %v1053, %v1084
      %v1090 = vmul.f32 %v1054, %v1084
      %v1091 = vmul.f32 %v1055, %v1084
      %v1092 = vmul.f32 %v1056, %v1084
      %v1093 = vmul.f32 %v1057, %v1084
      %v1094 = vmul.f32 %v1058, %v1084
      %v1095 = vmul.f32 %v1059, %v1084
      %v1096 = vmul.f32 %v1060, %v1084
      %v1097 = vmul.f32 %v1061, %v1084
      %v1098 = vmul.f32 %v1062, %v1084
      %v1099 = vmul.f32 %v1063, %v1084
      %v1100 = vmul.f32 %v1064, %v1084
      %v1101 = vmul.f32 %v1065, %v1084
      %v1102 = vmul.f32 %v1066, %v1084
      %v1103 = vmul.f32 %v1067, %v1084
      %v1104 = vmul.f32 %v1068, %v1084
      %v1105 = vmul.f32 %v1069, %v1084
      %v1106 = vmul.f32 %v1070, %v1084
      %v1107 = vmul.f32 %v1071, %v1084
      %v1108 = vmul.f32 %v1072, %v1084
      %v1109 = vmul.f32 %v1073, %v1084
      %v1110 = vmul.f32 %v1074, %v1084
      %v1111 = vmul.f32 %v1075, %v1084
      %v1112 = vmul.f32 %v1076, %v1084
      %v1113 = vmul.f32 %v1077, %v1084
      %v1114 = vmul.f32 %v1078, %v1084
      %v1115 = vmul.f32 %v1079, %v1084
      %v1116 = vmul.f32 %v1080, %v1084
      %v1117 = vadd.f32 %v1017, %v1085
      %v1118 = vadd.f32 %v1018, %v1086
      %v1119 = vadd.f32 %v1019, %v1087
      %v1120 = vadd.f32 %v1020, %v1088
      %v1121 = vadd.f32 %v1021, %v1089
      %v1122 = vadd.f32 %v1022, %v1090
      %v1123 = vadd.f32 %v1023, %v1091
      %v1124 = vadd.f32 %v1024, %v1092
      %v1125 = vadd.f32 %v1025, %v1093
      %v1126 = vadd.f32 %v1026, %v1094
      %v1127 = vadd.f32 %v1027, %v1095
      %v1128 = vadd.f32 %v1028, %v1096
      %v1129 = vadd.f32 %v1029, %v1097
      %v1130 = vadd.f32 %v1030, %v1098
      %v1131 = vadd.f32 %v1031, %v1099
      %v1132 = vadd.f32 %v1032, %v1100
      %v1133 = vadd.f32 %v1033, %v1101
      %v1134 = vadd.f32 %v1034, %v1102
      %v1135 = vadd.f32 %v1035, %v1103
      %v1136 = vadd.f32 %v1036, %v1104
      %v1137 = vadd.f32 %v1037, %v1105
      %v1138 = vadd.f32 %v1038, %v1106
      %v1139 = vadd.f32 %v1039, %v1107
      %v1140 = vadd.f32 %v1040, %v1108
      %v1141 = vadd.f32 %v1041, %v1109
      %v1142 = vadd.f32 %v1042, %v1110
      %v1143 = vadd.f32 %v1043, %v1111
      %v1144 = vadd.f32 %v1044, %v1112
      %v1145 = vadd.f32 %v1045, %v1113
      %v1146 = vadd.f32 %v1046, %v1114
      %v1147 = vadd.f32 %v1047, %v1115
      %v1148 = vadd.f32 %v1048, %v1116
      %v1149 = vld [vmem:[%s613 + $0x2] sm:$0xff]
      %v1150 = vld [vmem:[%s613 + $0xa] sm:$0xff]
      %v1151 = vld [vmem:[%s613 + $0x1a] sm:$0xff]
      %v1152 = vld [vmem:[%s613 + $0x22] sm:$0xff]
      %v1153 = vld [vmem:[%s613 + $0x32] sm:$0xff]
      %v1154 = vld [vmem:[%s613 + $0x3a] sm:$0xff]
      %v1155 = vld [vmem:[%s613 + $0x4a] sm:$0xff]
      %v1156 = vld [vmem:[%s613 + $0x52] sm:$0xff]
      %v1157 = vld [vmem:[%s613 + $0x62] sm:$0xff]
      %v1158 = vld [vmem:[%s613 + $0x6a] sm:$0xff]
      %v1159 = vld [vmem:[%s613 + $0x7a] sm:$0xff]
      %v1160 = vld [vmem:[%s613 + $0x82] sm:$0xff]
      %v1161 = vld [vmem:[%s613 + $0x92] sm:$0xff]
      %v1162 = vld [vmem:[%s613 + $0x9a] sm:$0xff]
      %v1163 = vld [vmem:[%s613 + $0xaa] sm:$0xff]
      %v1164 = vld [vmem:[%s613 + $0xb2] sm:$0xff]
      %v1165 = vld [vmem:[%s613 + $0xc2] sm:$0xff]
      %v1166 = vld [vmem:[%s613 + $0xca] sm:$0xff]
      %v1167 = vld [vmem:[%s613 + $0xda] sm:$0xff]
      %v1168 = vld [vmem:[%s613 + $0xe2] sm:$0xff]
      %v1169 = vld [vmem:[%s613 + $0xf2] sm:$0xff]
      %v1170 = vld [vmem:[%s613 + $0xfa] sm:$0xff]
      %v1171 = vld [vmem:[%s613 + $0x10a] sm:$0xff]
      %v1172 = vld [vmem:[%s613 + $0x112] sm:$0xff]
      %v1173 = vld [vmem:[%s613 + $0x122] sm:$0xff]
      %v1174 = vld [vmem:[%s613 + $0x12a] sm:$0xff]
      %v1175 = vld [vmem:[%s613 + $0x13a] sm:$0xff]
      %v1176 = vld [vmem:[%s613 + $0x142] sm:$0xff]
      %v1177 = vld [vmem:[%s613 + $0x152] sm:$0xff]
      %v1178 = vld [vmem:[%s613 + $0x15a] sm:$0xff]
      %v1179 = vld [vmem:[%s613 + $0x16a] sm:$0xff]
      %v1180 = vld [vmem:[%s613 + $0x172] sm:$0xff]
      %v1181 = vlaneseq
      %v1182 = vshrl.u32 %v1181, 7
      %v1183 = vsub.s32 2, %v1182
      %v1184 = vrot.slane %v647, %v1183
      %v1185 = vmul.f32 %v1149, %v1184
      %v1186 = vmul.f32 %v1150, %v1184
      %v1187 = vmul.f32 %v1151, %v1184
      %v1188 = vmul.f32 %v1152, %v1184
      %v1189 = vmul.f32 %v1153, %v1184
      %v1190 = vmul.f32 %v1154, %v1184
      %v1191 = vmul.f32 %v1155, %v1184
      %v1192 = vmul.f32 %v1156, %v1184
      %v1193 = vmul.f32 %v1157, %v1184
      %v1194 = vmul.f32 %v1158, %v1184
      %v1195 = vmul.f32 %v1159, %v1184
      %v1196 = vmul.f32 %v1160, %v1184
      %v1197 = vmul.f32 %v1161, %v1184
      %v1198 = vmul.f32 %v1162, %v1184
      %v1199 = vmul.f32 %v1163, %v1184
      %v1200 = vmul.f32 %v1164, %v1184
      %v1201 = vmul.f32 %v1165, %v1184
      %v1202 = vmul.f32 %v1166, %v1184
      %v1203 = vmul.f32 %v1167, %v1184
      %v1204 = vmul.f32 %v1168, %v1184
      %v1205 = vmul.f32 %v1169, %v1184
      %v1206 = vmul.f32 %v1170, %v1184
      %v1207 = vmul.f32 %v1171, %v1184
      %v1208 = vmul.f32 %v1172, %v1184
      %v1209 = vmul.f32 %v1173, %v1184
      %v1210 = vmul.f32 %v1174, %v1184
      %v1211 = vmul.f32 %v1175, %v1184
      %v1212 = vmul.f32 %v1176, %v1184
      %v1213 = vmul.f32 %v1177, %v1184
      %v1214 = vmul.f32 %v1178, %v1184
      %v1215 = vmul.f32 %v1179, %v1184
      %v1216 = vmul.f32 %v1180, %v1184
      %v1217 = vadd.f32 %v1117, %v1185
      %v1218 = vadd.f32 %v1118, %v1186
      %v1219 = vadd.f32 %v1119, %v1187
      %v1220 = vadd.f32 %v1120, %v1188
      %v1221 = vadd.f32 %v1121, %v1189
      %v1222 = vadd.f32 %v1122, %v1190
      %v1223 = vadd.f32 %v1123, %v1191
      %v1224 = vadd.f32 %v1124, %v1192
      %v1225 = vadd.f32 %v1125, %v1193
      %v1226 = vadd.f32 %v1126, %v1194
      %v1227 = vadd.f32 %v1127, %v1195
      %v1228 = vadd.f32 %v1128, %v1196
      %v1229 = vadd.f32 %v1129, %v1197
      %v1230 = vadd.f32 %v1130, %v1198
      %v1231 = vadd.f32 %v1131, %v1199
      %v1232 = vadd.f32 %v1132, %v1200
      %v1233 = vadd.f32 %v1133, %v1201
      %v1234 = vadd.f32 %v1134, %v1202
      %v1235 = vadd.f32 %v1135, %v1203
      %v1236 = vadd.f32 %v1136, %v1204
      %v1237 = vadd.f32 %v1137, %v1205
      %v1238 = vadd.f32 %v1138, %v1206
      %v1239 = vadd.f32 %v1139, %v1207
      %v1240 = vadd.f32 %v1140, %v1208
      %v1241 = vadd.f32 %v1141, %v1209
      %v1242 = vadd.f32 %v1142, %v1210
      %v1243 = vadd.f32 %v1143, %v1211
      %v1244 = vadd.f32 %v1144, %v1212
      %v1245 = vadd.f32 %v1145, %v1213
      %v1246 = vadd.f32 %v1146, %v1214
      %v1247 = vadd.f32 %v1147, %v1215
      %v1248 = vadd.f32 %v1148, %v1216
      %s1249 = scalar_lea.vmem [#allocation2], 48
      %v1250 = vld [vmem:[%s1249] sm:$0xff]
      %v1251 = vld [vmem:[%s1249 + $0x8] sm:$0xff]
      %v1252 = vld [vmem:[%s1249 + $0x18] sm:$0xff]
      %v1253 = vld [vmem:[%s1249 + $0x20] sm:$0xff]
      %v1254 = vld [vmem:[%s1249 + $0x30] sm:$0xff]
      %v1255 = vld [vmem:[%s1249 + $0x38] sm:$0xff]
      %v1256 = vld [vmem:[%s1249 + $0x48] sm:$0xff]
      %v1257 = vld [vmem:[%s1249 + $0x50] sm:$0xff]
      %v1258 = vld [vmem:[%s1249 + $0x60] sm:$0xff]
      %v1259 = vld [vmem:[%s1249 + $0x68] sm:$0xff]
      %v1260 = vld [vmem:[%s1249 + $0x78] sm:$0xff]
      %v1261 = vld [vmem:[%s1249 + $0x80] sm:$0xff]
      %v1262 = vld [vmem:[%s1249 + $0x90] sm:$0xff]
      %v1263 = vld [vmem:[%s1249 + $0x98] sm:$0xff]
      %v1264 = vld [vmem:[%s1249 + $0xa8] sm:$0xff]
      %v1265 = vld [vmem:[%s1249 + $0xb0] sm:$0xff]
      %v1266 = vld [vmem:[%s1249 + $0xc0] sm:$0xff]
      %v1267 = vld [vmem:[%s1249 + $0xc8] sm:$0xff]
      %v1268 = vld [vmem:[%s1249 + $0xd8] sm:$0xff]
      %v1269 = vld [vmem:[%s1249 + $0xe0] sm:$0xff]
      %v1270 = vld [vmem:[%s1249 + $0xf0] sm:$0xff]
      %v1271 = vld [vmem:[%s1249 + $0xf8] sm:$0xff]
      %v1272 = vld [vmem:[%s1249 + $0x108] sm:$0xff]
      %v1273 = vld [vmem:[%s1249 + $0x110] sm:$0xff]
      %v1274 = vld [vmem:[%s1249 + $0x120] sm:$0xff]
      %v1275 = vld [vmem:[%s1249 + $0x128] sm:$0xff]
      %v1276 = vld [vmem:[%s1249 + $0x138] sm:$0xff]
      %v1277 = vld [vmem:[%s1249 + $0x140] sm:$0xff]
      %v1278 = vld [vmem:[%s1249 + $0x150] sm:$0xff]
      %v1279 = vld [vmem:[%s1249 + $0x158] sm:$0xff]
      %v1280 = vld [vmem:[%s1249 + $0x168] sm:$0xff]
      %v1281 = vld [vmem:[%s1249 + $0x170] sm:$0xff]
      %v1282 = vlaneseq
      %v1283 = vshrl.u32 %v1282, 7
      %v1284 = vsub.s32 0, %v1283
      %v1285 = vrot.slane %v648, %v1284
      %v1286 = vmul.f32 %v1250, %v1285
      %v1287 = vmul.f32 %v1251, %v1285
      %v1288 = vmul.f32 %v1252, %v1285
      %v1289 = vmul.f32 %v1253, %v1285
      %v1290 = vmul.f32 %v1254, %v1285
      %v1291 = vmul.f32 %v1255, %v1285
      %v1292 = vmul.f32 %v1256, %v1285
      %v1293 = vmul.f32 %v1257, %v1285
      %v1294 = vmul.f32 %v1258, %v1285
      %v1295 = vmul.f32 %v1259, %v1285
      %v1296 = vmul.f32 %v1260, %v1285
      %v1297 = vmul.f32 %v1261, %v1285
      %v1298 = vmul.f32 %v1262, %v1285
      %v1299 = vmul.f32 %v1263, %v1285
      %v1300 = vmul.f32 %v1264, %v1285
      %v1301 = vmul.f32 %v1265, %v1285
      %v1302 = vmul.f32 %v1266, %v1285
      %v1303 = vmul.f32 %v1267, %v1285
      %v1304 = vmul.f32 %v1268, %v1285
      %v1305 = vmul.f32 %v1269, %v1285
      %v1306 = vmul.f32 %v1270, %v1285
      %v1307 = vmul.f32 %v1271, %v1285
      %v1308 = vmul.f32 %v1272, %v1285
      %v1309 = vmul.f32 %v1273, %v1285
      %v1310 = vmul.f32 %v1274, %v1285
      %v1311 = vmul.f32 %v1275, %v1285
      %v1312 = vmul.f32 %v1276, %v1285
      %v1313 = vmul.f32 %v1277, %v1285
      %v1314 = vmul.f32 %v1278, %v1285
      %v1315 = vmul.f32 %v1279, %v1285
      %v1316 = vmul.f32 %v1280, %v1285
      %v1317 = vmul.f32 %v1281, %v1285
      %v1318 = vadd.f32 %v1217, %v1286
      %v1319 = vadd.f32 %v1218, %v1287
      %v1320 = vadd.f32 %v1219, %v1288
      %v1321 = vadd.f32 %v1220, %v1289
      %v1322 = vadd.f32 %v1221, %v1290
      %v1323 = vadd.f32 %v1222, %v1291
      %v1324 = vadd.f32 %v1223, %v1292
      %v1325 = vadd.f32 %v1224, %v1293
      %v1326 = vadd.f32 %v1225, %v1294
      %v1327 = vadd.f32 %v1226, %v1295
      %v1328 = vadd.f32 %v1227, %v1296
      %v1329 = vadd.f32 %v1228, %v1297
      %v1330 = vadd.f32 %v1229, %v1298
      %v1331 = vadd.f32 %v1230, %v1299
      %v1332 = vadd.f32 %v1231, %v1300
      %v1333 = vadd.f32 %v1232, %v1301
      %v1334 = vadd.f32 %v1233, %v1302
      %v1335 = vadd.f32 %v1234, %v1303
      %v1336 = vadd.f32 %v1235, %v1304
      %v1337 = vadd.f32 %v1236, %v1305
      %v1338 = vadd.f32 %v1237, %v1306
      %v1339 = vadd.f32 %v1238, %v1307
      %v1340 = vadd.f32 %v1239, %v1308
      %v1341 = vadd.f32 %v1240, %v1309
      %v1342 = vadd.f32 %v1241, %v1310
      %v1343 = vadd.f32 %v1242, %v1311
      %v1344 = vadd.f32 %v1243, %v1312
      %v1345 = vadd.f32 %v1244, %v1313
      %v1346 = vadd.f32 %v1245, %v1314
      %v1347 = vadd.f32 %v1246, %v1315
      %v1348 = vadd.f32 %v1247, %v1316
      %v1349 = vadd.f32 %v1248, %v1317
      %v1350 = vld [vmem:[%s1249 + $0x1] sm:$0xff]
      %v1351 = vld [vmem:[%s1249 + $0x9] sm:$0xff]
      %v1352 = vld [vmem:[%s1249 + $0x19] sm:$0xff]
      %v1353 = vld [vmem:[%s1249 + $0x21] sm:$0xff]
      %v1354 = vld [vmem:[%s1249 + $0x31] sm:$0xff]
      %v1355 = vld [vmem:[%s1249 + $0x39] sm:$0xff]
      %v1356 = vld [vmem:[%s1249 + $0x49] sm:$0xff]
      %v1357 = vld [vmem:[%s1249 + $0x51] sm:$0xff]
      %v1358 = vld [vmem:[%s1249 + $0x61] sm:$0xff]
      %v1359 = vld [vmem:[%s1249 + $0x69] sm:$0xff]
      %v1360 = vld [vmem:[%s1249 + $0x79] sm:$0xff]
      %v1361 = vld [vmem:[%s1249 + $0x81] sm:$0xff]
      %v1362 = vld [vmem:[%s1249 + $0x91] sm:$0xff]
      %v1363 = vld [vmem:[%s1249 + $0x99] sm:$0xff]
      %v1364 = vld [vmem:[%s1249 + $0xa9] sm:$0xff]
      %v1365 = vld [vmem:[%s1249 + $0xb1] sm:$0xff]
      %v1366 = vld [vmem:[%s1249 + $0xc1] sm:$0xff]
      %v1367 = vld [vmem:[%s1249 + $0xc9] sm:$0xff]
      %v1368 = vld [vmem:[%s1249 + $0xd9] sm:$0xff]
      %v1369 = vld [vmem:[%s1249 + $0xe1] sm:$0xff]
      %v1370 = vld [vmem:[%s1249 + $0xf1] sm:$0xff]
      %v1371 = vld [vmem:[%s1249 + $0xf9] sm:$0xff]
      %v1372 = vld [vmem:[%s1249 + $0x109] sm:$0xff]
      %v1373 = vld [vmem:[%s1249 + $0x111] sm:$0xff]
      %v1374 = vld [vmem:[%s1249 + $0x121] sm:$0xff]
      %v1375 = vld [vmem:[%s1249 + $0x129] sm:$0xff]
      %v1376 = vld [vmem:[%s1249 + $0x139] sm:$0xff]
      %v1377 = vld [vmem:[%s1249 + $0x141] sm:$0xff]
      %v1378 = vld [vmem:[%s1249 + $0x151] sm:$0xff]
      %v1379 = vld [vmem:[%s1249 + $0x159] sm:$0xff]
      %v1380 = vld [vmem:[%s1249 + $0x169] sm:$0xff]
      %v1381 = vld [vmem:[%s1249 + $0x171] sm:$0xff]
      %v1382 = vlaneseq
      %v1383 = vshrl.u32 %v1382, 7
      %v1384 = vsub.s32 1, %v1383
      %v1385 = vrot.slane %v648, %v1384
      %v1386 = vmul.f32 %v1350, %v1385
      %v1387 = vmul.f32 %v1351, %v1385
      %v1388 = vmul.f32 %v1352, %v1385
      %v1389 = vmul.f32 %v1353, %v1385
      %v1390 = vmul.f32 %v1354, %v1385
      %v1391 = vmul.f32 %v1355, %v1385
      %v1392 = vmul.f32 %v1356, %v1385
      %v1393 = vmul.f32 %v1357, %v1385
      %v1394 = vmul.f32 %v1358, %v1385
      %v1395 = vmul.f32 %v1359, %v1385
      %v1396 = vmul.f32 %v1360, %v1385
      %v1397 = vmul.f32 %v1361, %v1385
      %v1398 = vmul.f32 %v1362, %v1385
      %v1399 = vmul.f32 %v1363, %v1385
      %v1400 = vmul.f32 %v1364, %v1385
      %v1401 = vmul.f32 %v1365, %v1385
      %v1402 = vmul.f32 %v1366, %v1385
      %v1403 = vmul.f32 %v1367, %v1385
      %v1404 = vmul.f32 %v1368, %v1385
      %v1405 = vmul.f32 %v1369, %v1385
      %v1406 = vmul.f32 %v1370, %v1385
      %v1407 = vmul.f32 %v1371, %v1385
      %v1408 = vmul.f32 %v1372, %v1385
      %v1409 = vmul.f32 %v1373, %v1385
      %v1410 = vmul.f32 %v1374, %v1385
      %v1411 = vmul.f32 %v1375, %v1385
      %v1412 = vmul.f32 %v1376, %v1385
      %v1413 = vmul.f32 %v1377, %v1385
      %v1414 = vmul.f32 %v1378, %v1385
      %v1415 = vmul.f32 %v1379, %v1385
      %v1416 = vmul.f32 %v1380, %v1385
      %v1417 = vmul.f32 %v1381, %v1385
      %v1418 = vadd.f32 %v1318, %v1386
      %v1419 = vadd.f32 %v1319, %v1387
      %v1420 = vadd.f32 %v1320, %v1388
      %v1421 = vadd.f32 %v1321, %v1389
      %v1422 = vadd.f32 %v1322, %v1390
      %v1423 = vadd.f32 %v1323, %v1391
      %v1424 = vadd.f32 %v1324, %v1392
      %v1425 = vadd.f32 %v1325, %v1393
      %v1426 = vadd.f32 %v1326, %v1394
      %v1427 = vadd.f32 %v1327, %v1395
      %v1428 = vadd.f32 %v1328, %v1396
      %v1429 = vadd.f32 %v1329, %v1397
      %v1430 = vadd.f32 %v1330, %v1398
      %v1431 = vadd.f32 %v1331, %v1399
      %v1432 = vadd.f32 %v1332, %v1400
      %v1433 = vadd.f32 %v1333, %v1401
      %v1434 = vadd.f32 %v1334, %v1402
      %v1435 = vadd.f32 %v1335, %v1403
      %v1436 = vadd.f32 %v1336, %v1404
      %v1437 = vadd.f32 %v1337, %v1405
      %v1438 = vadd.f32 %v1338, %v1406
      %v1439 = vadd.f32 %v1339, %v1407
      %v1440 = vadd.f32 %v1340, %v1408
      %v1441 = vadd.f32 %v1341, %v1409
      %v1442 = vadd.f32 %v1342, %v1410
      %v1443 = vadd.f32 %v1343, %v1411
      %v1444 = vadd.f32 %v1344, %v1412
      %v1445 = vadd.f32 %v1345, %v1413
      %v1446 = vadd.f32 %v1346, %v1414
      %v1447 = vadd.f32 %v1347, %v1415
      %v1448 = vadd.f32 %v1348, %v1416
      %v1449 = vadd.f32 %v1349, %v1417
      %v1450 = vld [vmem:[%s1249 + $0x2] sm:$0xff]
      %v1451 = vld [vmem:[%s1249 + $0xa] sm:$0xff]
      %v1452 = vld [vmem:[%s1249 + $0x1a] sm:$0xff]
      %v1453 = vld [vmem:[%s1249 + $0x22] sm:$0xff]
      %v1454 = vld [vmem:[%s1249 + $0x32] sm:$0xff]
      %v1455 = vld [vmem:[%s1249 + $0x3a] sm:$0xff]
      %v1456 = vld [vmem:[%s1249 + $0x4a] sm:$0xff]
      %v1457 = vld [vmem:[%s1249 + $0x52] sm:$0xff]
      %v1458 = vld [vmem:[%s1249 + $0x62] sm:$0xff]
      %v1459 = vld [vmem:[%s1249 + $0x6a] sm:$0xff]
      %v1460 = vld [vmem:[%s1249 + $0x7a] sm:$0xff]
      %v1461 = vld [vmem:[%s1249 + $0x82] sm:$0xff]
      %v1462 = vld [vmem:[%s1249 + $0x92] sm:$0xff]
      %v1463 = vld [vmem:[%s1249 + $0x9a] sm:$0xff]
      %v1464 = vld [vmem:[%s1249 + $0xaa] sm:$0xff]
      %v1465 = vld [vmem:[%s1249 + $0xb2] sm:$0xff]
      %v1466 = vld [vmem:[%s1249 + $0xc2] sm:$0xff]
      %v1467 = vld [vmem:[%s1249 + $0xca] sm:$0xff]
      %v1468 = vld [vmem:[%s1249 + $0xda] sm:$0xff]
      %v1469 = vld [vmem:[%s1249 + $0xe2] sm:$0xff]
      %v1470 = vld [vmem:[%s1249 + $0xf2] sm:$0xff]
      %v1471 = vld [vmem:[%s1249 + $0xfa] sm:$0xff]
      %v1472 = vld [vmem:[%s1249 + $0x10a] sm:$0xff]
      %v1473 = vld [vmem:[%s1249 + $0x112] sm:$0xff]
      %v1474 = vld [vmem:[%s1249 + $0x122] sm:$0xff]
      %v1475 = vld [vmem:[%s1249 + $0x12a] sm:$0xff]
      %v1476 = vld [vmem:[%s1249 + $0x13a] sm:$0xff]
      %v1477 = vld [vmem:[%s1249 + $0x142] sm:$0xff]
      %v1478 = vld [vmem:[%s1249 + $0x152] sm:$0xff]
      %v1479 = vld [vmem:[%s1249 + $0x15a] sm:$0xff]
      %v1480 = vld [vmem:[%s1249 + $0x16a] sm:$0xff]
      %v1481 = vld [vmem:[%s1249 + $0x172] sm:$0xff]
      %v1482 = vlaneseq
      %v1483 = vshrl.u32 %v1482, 7
      %v1484 = vsub.s32 2, %v1483
      %v1485 = vrot.slane %v648, %v1484
      %v1486 = vmul.f32 %v1450, %v1485
      %v1487 = vmul.f32 %v1451, %v1485
      %v1488 = vmul.f32 %v1452, %v1485
      %v1489 = vmul.f32 %v1453, %v1485
      %v1490 = vmul.f32 %v1454, %v1485
      %v1491 = vmul.f32 %v1455, %v1485
      %v1492 = vmul.f32 %v1456, %v1485
      %v1493 = vmul.f32 %v1457, %v1485
      %v1494 = vmul.f32 %v1458, %v1485
      %v1495 = vmul.f32 %v1459, %v1485
      %v1496 = vmul.f32 %v1460, %v1485
      %v1497 = vmul.f32 %v1461, %v1485
      %v1498 = vmul.f32 %v1462, %v1485
      %v1499 = vmul.f32 %v1463, %v1485
      %v1500 = vmul.f32 %v1464, %v1485
      %v1501 = vmul.f32 %v1465, %v1485
      %v1502 = vmul.f32 %v1466, %v1485
      %v1503 = vmul.f32 %v1467, %v1485
      %v1504 = vmul.f32 %v1468, %v1485
      %v1505 = vmul.f32 %v1469, %v1485
      %v1506 = vmul.f32 %v1470, %v1485
      %v1507 = vmul.f32 %v1471, %v1485
      %v1508 = vmul.f32 %v1472, %v1485
      %v1509 = vmul.f32 %v1473, %v1485
      %v1510 = vmul.f32 %v1474, %v1485
      %v1511 = vmul.f32 %v1475, %v1485
      %v1512 = vmul.f32 %v1476, %v1485
      %v1513 = vmul.f32 %v1477, %v1485
      %v1514 = vmul.f32 %v1478, %v1485
      %v1515 = vmul.f32 %v1479, %v1485
      %v1516 = vmul.f32 %v1480, %v1485
      %v1517 = vmul.f32 %v1481, %v1485
      %v1518 = vadd.f32 %v1418, %v1486
      %v1519 = vadd.f32 %v1419, %v1487
      %v1520 = vadd.f32 %v1420, %v1488
      %v1521 = vadd.f32 %v1421, %v1489
      %v1522 = vadd.f32 %v1422, %v1490
      %v1523 = vadd.f32 %v1423, %v1491
      %v1524 = vadd.f32 %v1424, %v1492
      %v1525 = vadd.f32 %v1425, %v1493
      %v1526 = vadd.f32 %v1426, %v1494
      %v1527 = vadd.f32 %v1427, %v1495
      %v1528 = vadd.f32 %v1428, %v1496
      %v1529 = vadd.f32 %v1429, %v1497
      %v1530 = vadd.f32 %v1430, %v1498
      %v1531 = vadd.f32 %v1431, %v1499
      %v1532 = vadd.f32 %v1432, %v1500
      %v1533 = vadd.f32 %v1433, %v1501
      %v1534 = vadd.f32 %v1434, %v1502
      %v1535 = vadd.f32 %v1435, %v1503
      %v1536 = vadd.f32 %v1436, %v1504
      %v1537 = vadd.f32 %v1437, %v1505
      %v1538 = vadd.f32 %v1438, %v1506
      %v1539 = vadd.f32 %v1439, %v1507
      %v1540 = vadd.f32 %v1440, %v1508
      %v1541 = vadd.f32 %v1441, %v1509
      %v1542 = vadd.f32 %v1442, %v1510
      %v1543 = vadd.f32 %v1443, %v1511
      %v1544 = vadd.f32 %v1444, %v1512
      %v1545 = vadd.f32 %v1445, %v1513
      %v1546 = vadd.f32 %v1446, %v1514
      %v1547 = vadd.f32 %v1447, %v1515
      %v1548 = vadd.f32 %v1448, %v1516
      %v1549 = vadd.f32 %v1449, %v1517
      %v1550 = vxor.u32 %v1518, 2147483648
      %v1551 = vxor.u32 %v1519, 2147483648
      %v1552 = vxor.u32 %v1520, 2147483648
      %v1553 = vxor.u32 %v1521, 2147483648
      %v1554 = vxor.u32 %v1522, 2147483648
      %v1555 = vxor.u32 %v1523, 2147483648
      %v1556 = vxor.u32 %v1524, 2147483648
      %v1557 = vxor.u32 %v1525, 2147483648
      %v1558 = vxor.u32 %v1526, 2147483648
      %v1559 = vxor.u32 %v1527, 2147483648
      %v1560 = vxor.u32 %v1528, 2147483648
      %v1561 = vxor.u32 %v1529, 2147483648
      %v1562 = vxor.u32 %v1530, 2147483648
      %v1563 = vxor.u32 %v1531, 2147483648
      %v1564 = vxor.u32 %v1532, 2147483648
      %v1565 = vxor.u32 %v1533, 2147483648
      %v1566 = vxor.u32 %v1534, 2147483648
      %v1567 = vxor.u32 %v1535, 2147483648
      %v1568 = vxor.u32 %v1536, 2147483648
      %v1569 = vxor.u32 %v1537, 2147483648
      %v1570 = vxor.u32 %v1538, 2147483648
      %v1571 = vxor.u32 %v1539, 2147483648
      %v1572 = vxor.u32 %v1540, 2147483648
      %v1573 = vxor.u32 %v1541, 2147483648
      %v1574 = vxor.u32 %v1542, 2147483648
      %v1575 = vxor.u32 %v1543, 2147483648
      %v1576 = vxor.u32 %v1544, 2147483648
      %v1577 = vxor.u32 %v1545, 2147483648
      %v1578 = vxor.u32 %v1546, 2147483648
      %v1579 = vxor.u32 %v1547, 2147483648
      %v1580 = vxor.u32 %v1548, 2147483648
      %v1581 = vxor.u32 %v1549, 2147483648
      %v1582 = vmul.f32 %v1550, 1.442695
      %v1583 = vpow.pop %v1582
      %v1584 = vmul.f32 %v1551, 1.442695
      %v1585 = vpow.pop %v1584
      %v1586 = vmul.f32 %v1552, 1.442695
      %v1587 = vpow.pop %v1586
      %v1588 = vmul.f32 %v1553, 1.442695
      %v1589 = vpow.pop %v1588
      %v1590 = vmul.f32 %v1554, 1.442695
      %v1591 = vpow.pop %v1590
      %v1592 = vmul.f32 %v1555, 1.442695
      %v1593 = vpow.pop %v1592
      %v1594 = vmul.f32 %v1556, 1.442695
      %v1595 = vpow.pop %v1594
      %v1596 = vmul.f32 %v1557, 1.442695
      %v1597 = vpow.pop %v1596
      %v1598 = vmul.f32 %v1558, 1.442695
      %v1599 = vpow.pop %v1598
      %v1600 = vmul.f32 %v1559, 1.442695
      %v1601 = vpow.pop %v1600
      %v1602 = vmul.f32 %v1560, 1.442695
      %v1603 = vpow.pop %v1602
      %v1604 = vmul.f32 %v1561, 1.442695
      %v1605 = vpow.pop %v1604
      %v1606 = vmul.f32 %v1562, 1.442695
      %v1607 = vpow.pop %v1606
      %v1608 = vmul.f32 %v1563, 1.442695
      %v1609 = vpow.pop %v1608
      %v1610 = vmul.f32 %v1564, 1.442695
      %v1611 = vpow.pop %v1610
      %v1612 = vmul.f32 %v1565, 1.442695
      %v1613 = vpow.pop %v1612
      %v1614 = vmul.f32 %v1566, 1.442695
      %v1615 = vpow.pop %v1614
      %v1616 = vmul.f32 %v1567, 1.442695
      %v1617 = vpow.pop %v1616
      %v1618 = vmul.f32 %v1568, 1.442695
      %v1619 = vpow.pop %v1618
      %v1620 = vmul.f32 %v1569, 1.442695
      %v1621 = vpow.pop %v1620
      %v1622 = vmul.f32 %v1570, 1.442695
      %v1623 = vpow.pop %v1622
      %v1624 = vmul.f32 %v1571, 1.442695
      %v1625 = vpow.pop %v1624
      %v1626 = vmul.f32 %v1572, 1.442695
      %v1627 = vpow.pop %v1626
      %v1628 = vmul.f32 %v1573, 1.442695
      %v1629 = vpow.pop %v1628
      %v1630 = vmul.f32 %v1574, 1.442695
      %v1631 = vpow.pop %v1630
      %v1632 = vmul.f32 %v1575, 1.442695
      %v1633 = vpow.pop %v1632
      %v1634 = vmul.f32 %v1576, 1.442695
      %v1635 = vpow.pop %v1634
      %v1636 = vmul.f32 %v1577, 1.442695
      %v1637 = vpow.pop %v1636
      %v1638 = vmul.f32 %v1578, 1.442695
      %v1639 = vpow.pop %v1638
      %v1640 = vmul.f32 %v1579, 1.442695
      %v1641 = vpow.pop %v1640
      %v1642 = vmul.f32 %v1580, 1.442695
      %v1643 = vpow.pop %v1642
      %v1644 = vmul.f32 %v1581, 1.442695
      %v1645 = vpow.pop %v1644
      %v1646 = vadd.f32 %v1583, 1.0
      %v1647 = vadd.f32 %v1585, 1.0
      %v1648 = vadd.f32 %v1587, 1.0
      %v1649 = vadd.f32 %v1589, 1.0
      %v1650 = vadd.f32 %v1591, 1.0
      %v1651 = vadd.f32 %v1593, 1.0
      %v1652 = vadd.f32 %v1595, 1.0
      %v1653 = vadd.f32 %v1597, 1.0
      %v1654 = vadd.f32 %v1599, 1.0
      %v1655 = vadd.f32 %v1601, 1.0
      %v1656 = vadd.f32 %v1603, 1.0
      %v1657 = vadd.f32 %v1605, 1.0
      %v1658 = vadd.f32 %v1607, 1.0
      %v1659 = vadd.f32 %v1609, 1.0
      %v1660 = vadd.f32 %v1611, 1.0
      %v1661 = vadd.f32 %v1613, 1.0
      %v1662 = vadd.f32 %v1615, 1.0
      %v1663 = vadd.f32 %v1617, 1.0
      %v1664 = vadd.f32 %v1619, 1.0
      %v1665 = vadd.f32 %v1621, 1.0
      %v1666 = vadd.f32 %v1623, 1.0
      %v1667 = vadd.f32 %v1625, 1.0
      %v1668 = vadd.f32 %v1627, 1.0
      %v1669 = vadd.f32 %v1629, 1.0
      %v1670 = vadd.f32 %v1631, 1.0
      %v1671 = vadd.f32 %v1633, 1.0
      %v1672 = vadd.f32 %v1635, 1.0
      %v1673 = vadd.f32 %v1637, 1.0
      %v1674 = vadd.f32 %v1639, 1.0
      %v1675 = vadd.f32 %v1641, 1.0
      %v1676 = vadd.f32 %v1643, 1.0
      %v1677 = vadd.f32 %v1645, 1.0
      %v1678 = vrcp.pop %v1646
      %v1679 = vmul.f32 1.0, %v1678
      %v1680 = vrcp.pop %v1647
      %v1681 = vmul.f32 1.0, %v1680
      %v1682 = vrcp.pop %v1648
      %v1683 = vmul.f32 1.0, %v1682
      %v1684 = vrcp.pop %v1649
      %v1685 = vmul.f32 1.0, %v1684
      %v1686 = vrcp.pop %v1650
      %v1687 = vmul.f32 1.0, %v1686
      %v1688 = vrcp.pop %v1651
      %v1689 = vmul.f32 1.0, %v1688
      %v1690 = vrcp.pop %v1652
      %v1691 = vmul.f32 1.0, %v1690
      %v1692 = vrcp.pop %v1653
      %v1693 = vmul.f32 1.0, %v1692
      %v1694 = vrcp.pop %v1654
      %v1695 = vmul.f32 1.0, %v1694
      %v1696 = vrcp.pop %v1655
      %v1697 = vmul.f32 1.0, %v1696
      %v1698 = vrcp.pop %v1656
      %v1699 = vmul.f32 1.0, %v1698
      %v1700 = vrcp.pop %v1657
      %v1701 = vmul.f32 1.0, %v1700
      %v1702 = vrcp.pop %v1658
      %v1703 = vmul.f32 1.0, %v1702
      %v1704 = vrcp.pop %v1659
      %v1705 = vmul.f32 1.0, %v1704
      %v1706 = vrcp.pop %v1660
      %v1707 = vmul.f32 1.0, %v1706
      %v1708 = vrcp.pop %v1661
      %v1709 = vmul.f32 1.0, %v1708
      %v1710 = vrcp.pop %v1662
      %v1711 = vmul.f32 1.0, %v1710
      %v1712 = vrcp.pop %v1663
      %v1713 = vmul.f32 1.0, %v1712
      %v1714 = vrcp.pop %v1664
      %v1715 = vmul.f32 1.0, %v1714
      %v1716 = vrcp.pop %v1665
      %v1717 = vmul.f32 1.0, %v1716
      %v1718 = vrcp.pop %v1666
      %v1719 = vmul.f32 1.0, %v1718
      %v1720 = vrcp.pop %v1667
      %v1721 = vmul.f32 1.0, %v1720
      %v1722 = vrcp.pop %v1668
      %v1723 = vmul.f32 1.0, %v1722
      %v1724 = vrcp.pop %v1669
      %v1725 = vmul.f32 1.0, %v1724
      %v1726 = vrcp.pop %v1670
      %v1727 = vmul.f32 1.0, %v1726
      %v1728 = vrcp.pop %v1671
      %v1729 = vmul.f32 1.0, %v1728
      %v1730 = vrcp.pop %v1672
      %v1731 = vmul.f32 1.0, %v1730
      %v1732 = vrcp.pop %v1673
      %v1733 = vmul.f32 1.0, %v1732
      %v1734 = vrcp.pop %v1674
      %v1735 = vmul.f32 1.0, %v1734
      %v1736 = vrcp.pop %v1675
      %v1737 = vmul.f32 1.0, %v1736
      %v1738 = vrcp.pop %v1676
      %v1739 = vmul.f32 1.0, %v1738
      %v1740 = vrcp.pop %v1677
      %v1741 = vmul.f32 1.0, %v1740
      %v1742 = vmul.f32 %v1518, %v1679
      %v1743 = vmul.f32 %v1519, %v1681
      %v1744 = vmul.f32 %v1520, %v1683
      %v1745 = vmul.f32 %v1521, %v1685
      %v1746 = vmul.f32 %v1522, %v1687
      %v1747 = vmul.f32 %v1523, %v1689
      %v1748 = vmul.f32 %v1524, %v1691
      %v1749 = vmul.f32 %v1525, %v1693
      %v1750 = vmul.f32 %v1526, %v1695
      %v1751 = vmul.f32 %v1527, %v1697
      %v1752 = vmul.f32 %v1528, %v1699
      %v1753 = vmul.f32 %v1529, %v1701
      %v1754 = vmul.f32 %v1530, %v1703
      %v1755 = vmul.f32 %v1531, %v1705
      %v1756 = vmul.f32 %v1532, %v1707
      %v1757 = vmul.f32 %v1533, %v1709
      %v1758 = vmul.f32 %v1534, %v1711
      %v1759 = vmul.f32 %v1535, %v1713
      %v1760 = vmul.f32 %v1536, %v1715
      %v1761 = vmul.f32 %v1537, %v1717
      %v1762 = vmul.f32 %v1538, %v1719
      %v1763 = vmul.f32 %v1539, %v1721
      %v1764 = vmul.f32 %v1540, %v1723
      %v1765 = vmul.f32 %v1541, %v1725
      %v1766 = vmul.f32 %v1542, %v1727
      %v1767 = vmul.f32 %v1543, %v1729
      %v1768 = vmul.f32 %v1544, %v1731
      %v1769 = vmul.f32 %v1545, %v1733
      %v1770 = vmul.f32 %v1546, %v1735
      %v1771 = vmul.f32 %v1547, %v1737
      %v1772 = vmul.f32 %v1548, %v1739
      %v1773 = vmul.f32 %v1549, %v1741
      %v1774 = vld [vmem:[%s3] sm:$0xff]
      %v1775 = vld [vmem:[%s3 + $0x8] sm:$0xff]
      %v1777 = vsel %vm557, %v1742, 0
      %v1780 = vsel %vm557, %v1743, 0
      %v1783 = vsel %vm557, %v1744, 0
      %v1786 = vsel %vm557, %v1745, 0
      %v1789 = vsel %vm557, %v1746, 0
      %v1792 = vsel %vm557, %v1747, 0
      %v1795 = vsel %vm557, %v1748, 0
      %v1798 = vsel %vm557, %v1749, 0
      %v1801 = vsel %vm557, %v1750, 0
      %v1804 = vsel %vm557, %v1751, 0
      %v1807 = vsel %vm557, %v1752, 0
      %v1810 = vsel %vm557, %v1753, 0
      %v1813 = vsel %vm557, %v1754, 0
      %v1816 = vsel %vm557, %v1755, 0
      %v1819 = vsel %vm557, %v1756, 0
      %v1822 = vsel %vm557, %v1757, 0
      %v1825 = vsel %vm557, %v1758, 0
      %v1828 = vsel %vm557, %v1759, 0
      %v1831 = vsel %vm557, %v1760, 0
      %v1834 = vsel %vm557, %v1761, 0
      %v1837 = vsel %vm557, %v1762, 0
      %v1840 = vsel %vm557, %v1763, 0
      %v1843 = vsel %vm557, %v1764, 0
      %v1846 = vsel %vm557, %v1765, 0
      %v1849 = vsel %vm557, %v1766, 0
      %v1852 = vsel %vm557, %v1767, 0
      %v1855 = vsel %vm557, %v1768, 0
      %v1858 = vsel %vm557, %v1769, 0
      %v1861 = vsel %vm557, %v1770, 0
      %v1864 = vsel %vm557, %v1771, 0
      %v1867 = vsel %vm557, %v1772, 0
      %v1870 = vsel %vm557, %v1773, 0
      %1872 = vmatprep.subr.mxu0 0.0
      %1873 = vmatpush1.msra.mxu0 %v1774
      %1874 = vmatprep.subr.mxu0 0.0
      %1875 = vmatpush1.msra.mxu0 %v1775
      %1876 = vmatprep.subr.mxu0 0.0
      %1877 = vmatpush1.msra.mxu0 0.0
      %1878 = vmatprep.subr.mxu0 0.0
      %1879 = vmatpush1.msra.mxu0 0.0
      %1880 = vmatprep.subr.mxu0 0.0
      %1881 = vmatpush1.msra.mxu0 0.0
      %1882 = vmatprep.subr.mxu0 0.0
      %1883 = vmatpush1.msra.mxu0 0.0
      %1884 = vmatprep.subr.mxu0 0.0
      %1885 = vmatpush1.msra.mxu0 0.0
      %1886 = vmatprep.subr.mxu0 0.0
      %1887 = vmatpush1.msra.mxu0 0.0
      %1888 = vmatprep.subr.mxu0 0.0
      %1889 = vmatpush1.msra.mxu0 0.0
      %1890 = vmatprep.subr.mxu0 0.0
      %1891 = vmatpush1.msra.mxu0 0.0
      %1892 = vmatprep.subr.mxu0 0.0
      %1893 = vmatpush1.msra.mxu0 0.0
      %1894 = vmatprep.subr.mxu0 0.0
      %1895 = vmatpush1.msra.mxu0 0.0
      %1896 = vmatprep.subr.mxu0 0.0
      %1897 = vmatpush1.msra.mxu0 0.0
      %1898 = vmatprep.subr.mxu0 0.0
      %1899 = vmatpush1.msra.mxu0 0.0
      %1900 = vmatprep.subr.mxu0 0.0
      %1901 = vmatpush1.msra.mxu0 0.0
      %1902 = vmatprep.subr.mxu0 0.0
      %1903 = vmatpush1.msra.mxu0 0.0
      %1904 = vmatprep.subr.mxu0 0.0
      %1905 = vmatpush1.msra.mxu0 0.0
      %1906 = vmatprep.subr.mxu0 0.0
      %1907 = vmatpush1.msra.mxu0 0.0
      %1908 = vmatprep.subr.mxu0 0.0
      %1909 = vmatpush1.msra.mxu0 0.0
      %1910 = vmatprep.subr.mxu0 0.0
      %1911 = vmatpush1.msra.mxu0 0.0
      %1912 = vmatprep.subr.mxu0 0.0
      %1913 = vmatpush1.msra.mxu0 0.0
      %1914 = vmatprep.subr.mxu0 0.0
      %1915 = vmatpush1.msra.mxu0 0.0
      %1916 = vmatprep.subr.mxu0 0.0
      %1917 = vmatpush1.msra.mxu0 0.0
      %1918 = vmatprep.subr.mxu0 0.0
      %1919 = vmatpush1.msra.mxu0 0.0
      %1920 = vmatprep.subr.mxu0 0.0
      %1921 = vmatpush1.msra.mxu0 0.0
      %1922 = vmatprep.subr.mxu0 0.0
      %1923 = vmatpush1.msra.mxu0 0.0
      %1924 = vmatprep.subr.mxu0 0.0
      %1925 = vmatpush1.msra.mxu0 0.0
      %1926 = vmatprep.subr.mxu0 0.0
      %1927 = vmatpush1.msra.mxu0 0.0
      %1928 = vmatprep.subr.mxu0 0.0
      %1929 = vmatpush1.msra.mxu0 0.0
      %1930 = vmatprep.subr.mxu0 0.0
      %1931 = vmatpush1.msra.mxu0 0.0
      %1932 = vmatprep.subr.mxu0 0.0
      %1933 = vmatpush1.msra.mxu0 0.0
      %1934 = vmatprep.subr.mxu0 0.0
      %1935 = vmatpush1.msra.mxu0 0.0
      %1936 = vmatprep.mubr.f32.mxu0 0.0
      %1937 = vmatmul.mubr.f32.gmra.mrb[0].mxu0 %v1777
      %v1938 = vpop.f32.mrb[0].mxu0
      %v1939 = vadd.f32 0.0, %v1938
      %v1940 = vpop.f32.mrb[0].mxu0
      %1941 = vmatprep.mubr.f32.mxu0 0.0
      %1942 = vmatmul.mubr.f32.gmra.mrb[0].mxu0 %v1780
      %v1943 = vpop.f32.mrb[0].mxu0
      %v1944 = vadd.f32 0.0, %v1943
      %v1945 = vpop.f32.mrb[0].mxu0
      %1946 = vmatprep.mubr.f32.mxu0 0.0
      %1947 = vmatmul.mubr.f32.gmra.mrb[0].mxu0 %v1783
      %v1948 = vpop.f32.mrb[0].mxu0
      %v1949 = vadd.f32 0.0, %v1948
      %v1950 = vpop.f32.mrb[0].mxu0
      %1951 = vmatprep.mubr.f32.mxu0 0.0
      %1952 = vmatmul.mubr.f32.gmra.mrb[0].mxu0 %v1786
      %v1953 = vpop.f32.mrb[0].mxu0
      %v1954 = vadd.f32 0.0, %v1953
      %v1955 = vpop.f32.mrb[0].mxu0
      %1956 = vmatprep.mubr.f32.mxu0 0.0
      %1957 = vmatmul.mubr.f32.gmra.mrb[0].mxu0 %v1789
      %v1958 = vpop.f32.mrb[0].mxu0
      %v1959 = vadd.f32 0.0, %v1958
      %v1960 = vpop.f32.mrb[0].mxu0
      %1961 = vmatprep.mubr.f32.mxu0 0.0
      %1962 = vmatmul.mubr.f32.gmra.mrb[0].mxu0 %v1792
      %v1963 = vpop.f32.mrb[0].mxu0
      %v1964 = vadd.f32 0.0, %v1963
      %v1965 = vpop.f32.mrb[0].mxu0
      %1966 = vmatprep.mubr.f32.mxu0 0.0
      %1967 = vmatmul.mubr.f32.gmra.mrb[0].mxu0 %v1795
      %v1968 = vpop.f32.mrb[0].mxu0
      %v1969 = vadd.f32 0.0, %v1968
      %v1970 = vpop.f32.mrb[0].mxu0
      %1971 = vmatprep.mubr.f32.mxu0 0.0
      %1972 = vmatmul.mubr.f32.gmra.mrb[0].mxu0 %v1798
      %v1973 = vpop.f32.mrb[0].mxu0
      %v1974 = vadd.f32 0.0, %v1973
      %v1975 = vpop.f32.mrb[0].mxu0
      %1976 = vmatprep.mubr.f32.mxu0 0.0
      %1977 = vmatmul.mubr.f32.gmra.mrb[0].mxu0 %v1801
      %v1978 = vpop.f32.mrb[0].mxu0
      %v1979 = vadd.f32 0.0, %v1978
      %v1980 = vpop.f32.mrb[0].mxu0
      %1981 = vmatprep.mubr.f32.mxu0 0.0
      %1982 = vmatmul.mubr.f32.gmra.mrb[0].mxu0 %v1804
      %v1983 = vpop.f32.mrb[0].mxu0
      %v1984 = vadd.f32 0.0, %v1983
      %v1985 = vpop.f32.mrb[0].mxu0
      %1986 = vmatprep.mubr.f32.mxu0 0.0
      %1987 = vmatmul.mubr.f32.gmra.mrb[0].mxu0 %v1807
      %v1988 = vpop.f32.mrb[0].mxu0
      %v1989 = vadd.f32 0.0, %v1988
      %v1990 = vpop.f32.mrb[0].mxu0
      %1991 = vmatprep.mubr.f32.mxu0 0.0
      %1992 = vmatmul.mubr.f32.gmra.mrb[0].mxu0 %v1810
      %v1993 = vpop.f32.mrb[0].mxu0
      %v1994 = vadd.f32 0.0, %v1993
      %v1995 = vpop.f32.mrb[0].mxu0
      %1996 = vmatprep.mubr.f32.mxu0 0.0
      %1997 = vmatmul.mubr.f32.gmra.mrb[0].mxu0 %v1813
      %v1998 = vpop.f32.mrb[0].mxu0
      %v1999 = vadd.f32 0.0, %v1998
      %v2000 = vpop.f32.mrb[0].mxu0
      %2001 = vmatprep.mubr.f32.mxu0 0.0
      %2002 = vmatmul.mubr.f32.gmra.mrb[0].mxu0 %v1816
      %v2003 = vpop.f32.mrb[0].mxu0
      %v2004 = vadd.f32 0.0, %v2003
      %v2005 = vpop.f32.mrb[0].mxu0
      %2006 = vmatprep.mubr.f32.mxu0 0.0
      %2007 = vmatmul.mubr.f32.gmra.mrb[0].mxu0 %v1819
      %v2008 = vpop.f32.mrb[0].mxu0
      %v2009 = vadd.f32 0.0, %v2008
      %v2010 = vpop.f32.mrb[0].mxu0
      %2011 = vmatprep.mubr.f32.mxu0 0.0
      %2012 = vmatmul.mubr.f32.gmra.mrb[0].mxu0 %v1822
      %v2013 = vpop.f32.mrb[0].mxu0
      %v2014 = vadd.f32 0.0, %v2013
      %v2015 = vpop.f32.mrb[0].mxu0
      %2016 = vmatprep.mubr.f32.mxu0 0.0
      %2017 = vmatmul.mubr.f32.gmra.mrb[0].mxu0 %v1825
      %v2018 = vpop.f32.mrb[0].mxu0
      %v2019 = vadd.f32 0.0, %v2018
      %v2020 = vpop.f32.mrb[0].mxu0
      %2021 = vmatprep.mubr.f32.mxu0 0.0
      %2022 = vmatmul.mubr.f32.gmra.mrb[0].mxu0 %v1828
      %v2023 = vpop.f32.mrb[0].mxu0
      %v2024 = vadd.f32 0.0, %v2023
      %v2025 = vpop.f32.mrb[0].mxu0
      %2026 = vmatprep.mubr.f32.mxu0 0.0
      %2027 = vmatmul.mubr.f32.gmra.mrb[0].mxu0 %v1831
      %v2028 = vpop.f32.mrb[0].mxu0
      %v2029 = vadd.f32 0.0, %v2028
      %v2030 = vpop.f32.mrb[0].mxu0
      %2031 = vmatprep.mubr.f32.mxu0 0.0
      %2032 = vmatmul.mubr.f32.gmra.mrb[0].mxu0 %v1834
      %v2033 = vpop.f32.mrb[0].mxu0
      %v2034 = vadd.f32 0.0, %v2033
      %v2035 = vpop.f32.mrb[0].mxu0
      %2036 = vmatprep.mubr.f32.mxu0 0.0
      %2037 = vmatmul.mubr.f32.gmra.mrb[0].mxu0 %v1837
      %v2038 = vpop.f32.mrb[0].mxu0
      %v2039 = vadd.f32 0.0, %v2038
      %v2040 = vpop.f32.mrb[0].mxu0
      %2041 = vmatprep.mubr.f32.mxu0 0.0
      %2042 = vmatmul.mubr.f32.gmra.mrb[0].mxu0 %v1840
      %v2043 = vpop.f32.mrb[0].mxu0
      %v2044 = vadd.f32 0.0, %v2043
      %v2045 = vpop.f32.mrb[0].mxu0
      %2046 = vmatprep.mubr.f32.mxu0 0.0
      %2047 = vmatmul.mubr.f32.gmra.mrb[0].mxu0 %v1843
      %v2048 = vpop.f32.mrb[0].mxu0
      %v2049 = vadd.f32 0.0, %v2048
      %v2050 = vpop.f32.mrb[0].mxu0
      %2051 = vmatprep.mubr.f32.mxu0 0.0
      %2052 = vmatmul.mubr.f32.gmra.mrb[0].mxu0 %v1846
      %v2053 = vpop.f32.mrb[0].mxu0
      %v2054 = vadd.f32 0.0, %v2053
      %v2055 = vpop.f32.mrb[0].mxu0
      %2056 = vmatprep.mubr.f32.mxu0 0.0
      %2057 = vmatmul.mubr.f32.gmra.mrb[0].mxu0 %v1849
      %v2058 = vpop.f32.mrb[0].mxu0
      %v2059 = vadd.f32 0.0, %v2058
      %v2060 = vpop.f32.mrb[0].mxu0
      %2061 = vmatprep.mubr.f32.mxu0 0.0
      %2062 = vmatmul.mubr.f32.gmra.mrb[0].mxu0 %v1852
      %v2063 = vpop.f32.mrb[0].mxu0
      %v2064 = vadd.f32 0.0, %v2063
      %v2065 = vpop.f32.mrb[0].mxu0
      %2066 = vmatprep.mubr.f32.mxu0 0.0
      %2067 = vmatmul.mubr.f32.gmra.mrb[0].mxu0 %v1855
      %v2068 = vpop.f32.mrb[0].mxu0
      %v2069 = vadd.f32 0.0, %v2068
      %v2070 = vpop.f32.mrb[0].mxu0
      %2071 = vmatprep.mubr.f32.mxu0 0.0
      %2072 = vmatmul.mubr.f32.gmra.mrb[0].mxu0 %v1858
      %v2073 = vpop.f32.mrb[0].mxu0
      %v2074 = vadd.f32 0.0, %v2073
      %v2075 = vpop.f32.mrb[0].mxu0
      %2076 = vmatprep.mubr.f32.mxu0 0.0
      %2077 = vmatmul.mubr.f32.gmra.mrb[0].mxu0 %v1861
      %v2078 = vpop.f32.mrb[0].mxu0
      %v2079 = vadd.f32 0.0, %v2078
      %v2080 = vpop.f32.mrb[0].mxu0
      %2081 = vmatprep.mubr.f32.mxu0 0.0
      %2082 = vmatmul.mubr.f32.gmra.mrb[0].mxu0 %v1864
      %v2083 = vpop.f32.mrb[0].mxu0
      %v2084 = vadd.f32 0.0, %v2083
      %v2085 = vpop.f32.mrb[0].mxu0
      %2086 = vmatprep.mubr.f32.mxu0 0.0
      %2087 = vmatmul.mubr.f32.gmra.mrb[0].mxu0 %v1867
      %v2088 = vpop.f32.mrb[0].mxu0
      %v2089 = vadd.f32 0.0, %v2088
      %v2090 = vpop.f32.mrb[0].mxu0
      %2091 = vmatprep.mubr.f32.mxu0 0.0
      %2092 = vmatmul.mubr.f32.gmra.mrb[0].mxu0 %v1870
      %v2093 = vpop.f32.mrb[0].mxu0
      %v2094 = vadd.f32 0.0, %v2093
      %v2095 = vpop.f32.mrb[0].mxu0
      %2096 = vdwg.mxu0
      %2097 = vst.msk [vmem:[%s197] sm:$0xff] %vm231, %v1939
      %2098 = vst.msk [vmem:[%s197 + $0x8] sm:$0xff] %vm231, %v1944
      %2099 = vst.msk [vmem:[%s197 + $0x10] sm:$0xff] %vm231, %v1949
      %2100 = vst.msk [vmem:[%s197 + $0x18] sm:$0xff] %vm231, %v1954
      %2101 = vst.msk [vmem:[%s197 + $0x20] sm:$0xff] %vm231, %v1959
      %2102 = vst.msk [vmem:[%s197 + $0x28] sm:$0xff] %vm231, %v1964
      %2103 = vst.msk [vmem:[%s197 + $0x30] sm:$0xff] %vm231, %v1969
      %2104 = vst.msk [vmem:[%s197 + $0x38] sm:$0xff] %vm231, %v1974
      %2105 = vst.msk [vmem:[%s197 + $0x40] sm:$0xff] %vm231, %v1979
      %2106 = vst.msk [vmem:[%s197 + $0x48] sm:$0xff] %vm231, %v1984
      %2107 = vst.msk [vmem:[%s197 + $0x50] sm:$0xff] %vm231, %v1989
      %2108 = vst.msk [vmem:[%s197 + $0x58] sm:$0xff] %vm231, %v1994
      %2109 = vst.msk [vmem:[%s197 + $0x60] sm:$0xff] %vm231, %v1999
      %2110 = vst.msk [vmem:[%s197 + $0x68] sm:$0xff] %vm231, %v2004
      %2111 = vst.msk [vmem:[%s197 + $0x70] sm:$0xff] %vm231, %v2009
      %2112 = vst.msk [vmem:[%s197 + $0x78] sm:$0xff] %vm231, %v2014
      %2113 = vst.msk [vmem:[%s197 + $0x80] sm:$0xff] %vm231, %v2019
      %2114 = vst.msk [vmem:[%s197 + $0x88] sm:$0xff] %vm231, %v2024
      %2115 = vst.msk [vmem:[%s197 + $0x90] sm:$0xff] %vm231, %v2029
      %2116 = vst.msk [vmem:[%s197 + $0x98] sm:$0xff] %vm231, %v2034
      %2117 = vst.msk [vmem:[%s197 + $0xa0] sm:$0xff] %vm231, %v2039
      %2118 = vst.msk [vmem:[%s197 + $0xa8] sm:$0xff] %vm231, %v2044
      %2119 = vst.msk [vmem:[%s197 + $0xb0] sm:$0xff] %vm231, %v2049
      %2120 = vst.msk [vmem:[%s197 + $0xb8] sm:$0xff] %vm231, %v2054
      %2121 = vst.msk [vmem:[%s197 + $0xc0] sm:$0xff] %vm231, %v2059
      %2122 = vst.msk [vmem:[%s197 + $0xc8] sm:$0xff] %vm231, %v2064
      %2123 = vst.msk [vmem:[%s197 + $0xd0] sm:$0xff] %vm231, %v2069
      %2124 = vst.msk [vmem:[%s197 + $0xd8] sm:$0xff] %vm231, %v2074
      %2125 = vst.msk [vmem:[%s197 + $0xe0] sm:$0xff] %vm231, %v2079
      %2126 = vst.msk [vmem:[%s197 + $0xe8] sm:$0xff] %vm231, %v2084
      %2127 = vst.msk [vmem:[%s197 + $0xf0] sm:$0xff] %vm231, %v2089
      %2128 = vst.msk [vmem:[%s197 + $0xf8] sm:$0xff] %vm231, %v2094
      %p2129 = scmp.lt.s32.totalorder %s15, 1
      %s2130 = scalar_select %p2129, %s15, 1
      %s2131 = smul.addr %s2130, 32
      %s2132 = smul.addr %s2131, 8
      %s2133 = scalar_lea.vmem %s4, %s2132
      // Predicated region
      $region37: #{tpu_custom_call.1} parent=35 // pred_check
        %p2134 = pneg %p122
      $region38: #{tpu_custom_call.1} parent=35 // pred_check_branch
        %2136 = sbr.rel (%p2134) target = $region40
      $region39: #{tpu_custom_call.1} parent=35 // pred_region
        _
      $region40: #{tpu_custom_call.1} parent=35 // pred_fallthru
        _
    $region36: #{tpu_custom_call.1} parent=5 // pred_fallthru
      _
    %p2137 = scmp.le.s32.totalorder 2, %s10
    // Predicated region
    $region41: #{tpu_custom_call.1} parent=5 // pred_check
      %p2138 = pneg %p2137
    $region42: #{tpu_custom_call.1} parent=5 // pred_check_branch
      %2140 = sbr.rel (%p2138) target = $region44
    $region43: #{tpu_custom_call.1} parent=5 // pred_region
      %s2141 = ssub.s32 %s10, 2
      // Predicated region
      $region45: #{tpu_custom_call.1} parent=43 // pred_check
        %p2142 = pneg %p128
      $region46: #{tpu_custom_call.1} parent=43 // pred_check_branch
        %2144 = sbr.rel (%p2142) target = $region48
      $region47: #{tpu_custom_call.1} parent=43 // pred_region
        %p2145 = scmp.lt.s32.totalorder %s16, 1
        %s2146 = scalar_select %p2145, %s16, 1
        %s2147 = smul.addr %s2146, 32
        %s2148 = smul.addr %s2147, 8
        %s2149 = scalar_lea.vmem %s4, %s2148
      $region48: #{tpu_custom_call.1} parent=43 // pred_fallthru
        _
    $region44: #{tpu_custom_call.1} parent=5 // pred_fallthru
      _
  $region6: #{tpu_custom_call.1} parent=0 // loop_footer
    %s14 = sadd.s32 1, %s10
  $region7: #{tpu_custom_call.1} parent=0 // loop_footer_branch
    %9 = sbr.rel target = $region3
  $region8: #{tpu_custom_call.1} parent=0 // loop_exit
    _

</llo_original>
